<compile_context>
chip_gen: v7x
topology: tpu7x:2x2x1
jax: 0.10.0
libtpu: 0.0.40
codegen_flags: <defaults>
</compile_context>

<pallas_src>
import jax
import jax.numpy as jnp
from jax.experimental import pallas as pl
from jax.experimental.pallas import tpu as pltpu

# ----------------------------- configuration ------------------------------
B = 8                                   # batch
NUM_FEATURES = 8                        # sparse features; last one is the domain id
EMBED_DIM = 4
DIMS = NUM_FEATURES * EMBED_DIM         # 32 = sum of embed dims
N_CROSS = 2                             # n_cross_layers
MLP_DIMS = [64, 32]                     # mlp_params["dims"], output_layer=False
OUT_SHAPE = MLP_DIMS[-1]                # 32
FCN_DIMS = [32, 32]                     # fcn_dims (FCN_DIMS[0] must equal OUT_SHAPE)
FCN_IN, FCN_OUT = FCN_DIMS[0], FCN_DIMS[-1]
DOMAIN_NUM = 2
TASK_NUM = 2
EXPERT_NUM = 3
G = DOMAIN_NUM * TASK_NUM               # number of gates / towers = 4
EPS = 1e-5
VOCAB = 10                              # vocab slot width per feature in stacked table
EG_COLS = EXPERT_NUM * FCN_OUT + G * EXPERT_NUM     # 96 + 12 = 108 packed expert+gate cols
P_COLS = 128                            # packed-parameter buffer lane width

assert FCN_IN == OUT_SHAPE, "gate/expert input dim must equal MLP output dim"


# --------------------- packed-parameter buffer layout -----------------------
def _build_layout():
    layout = {}
    r = 0

    def add(name, rows, cols):
        nonlocal r
        layout[name] = (r, rows, cols)
        r += ((rows + 7) // 8) * 8      # keep every entry 8-sublane aligned

    add("emb", NUM_FEATURES * VOCAB, DIMS)        # block-diag stacked embedding table
    add("cross_w", N_CROSS, DIMS)
    add("cross_b", N_CROSS, DIMS)
    add("mlp_w1", DIMS, MLP_DIMS[0])
    add("mlp_b1", 1, MLP_DIMS[0])
    add("bn1_g", 1, MLP_DIMS[0])
    add("bn1_b", 1, MLP_DIMS[0])
    add("mlp_w2", MLP_DIMS[0], MLP_DIMS[1])
    add("mlp_b2", 1, MLP_DIMS[1])
    add("bn2_g", 1, MLP_DIMS[1])
    add("bn2_b", 1, MLP_DIMS[1])
    add("lr_w", 1, DIMS + OUT_SHAPE)
    add("lr_b", 1, 1)
    add("eg_w", FCN_IN, EG_COLS)                  # experts + gates packed along N
    add("eg_b", 1, EG_COLS)
    add("ln_g", EXPERT_NUM, FCN_OUT)
    add("ln_b", EXPERT_NUM, FCN_OUT)
    add("t1_w", G * FCN_OUT, G * FCN_OUT)         # block-diagonal tower hidden weights
    add("t1_b", 1, G * FCN_OUT)
    add("tbn_g", 1, G * FCN_OUT)
    add("tbn_b", 1, G * FCN_OUT)
    add("t2_w", G * FCN_OUT, G)                   # block-structured tower output weights
    add("t2_b", 1, G)
    return layout, r


LAYOUT, P_ROWS = _build_layout()


def _ln(x, gamma, beta):
    """nn.LayerNorm over last dim (biased variance, eps=1e-5)."""
    mu = jnp.mean(x, axis=-1, keepdims=True)
    var = jnp.mean((x - mu) ** 2, axis=-1, keepdims=True)
    return (x - mu) * jax.lax.rsqrt(var + EPS) * gamma + beta


def _bn(x, gamma, beta):
    """nn.BatchNorm1d in training mode: per-column batch statistics."""
    mu = jnp.mean(x, axis=0, keepdims=True)
    var = jnp.mean((x - mu) ** 2, axis=0, keepdims=True)
    return (x - mu) * jax.lax.rsqrt(var + EPS) * gamma + beta


# ------------------------- the single fused kernel -------------------------
def dcn_mmoe_kernel(idx_ref, p_ref, out_ref):
    def P(name, row_off=0, rows=None):
        r, n, c = LAYOUT[name]
        n = n if rows is None else rows
        return p_ref[r + row_off:r + row_off + n, 0:c]       # static slice -> cheap view

    idx = idx_ref[...]                                        # (B, F) int32
    bsz = idx.shape[0]
    did = idx[:, NUM_FEATURES - 1:NUM_FEATURES]               # (B, 1) domain id
    masks = [did == d for d in range(DOMAIN_NUM)]

    # ---- fused embedding lookup: one-hot (B, F*VOCAB) @ block-diag table ---
    feat_off = jax.lax.broadcasted_iota(jnp.int32, (bsz, NUM_FEATURES), 1) * VOCAB
    flat = idx + feat_off                                     # (B, F) flat slot ids
    col = jax.lax.broadcasted_iota(jnp.int32, (bsz, NUM_FEATURES * VOCAB), 1)
    onehot = jnp.zeros((bsz, NUM_FEATURES * VOCAB), jnp.float32)
    for f in range(NUM_FEATURES):
        onehot = onehot + (col == flat[:, f:f + 1]).astype(jnp.float32)
    x0 = jnp.dot(onehot, P("emb"), preferred_element_type=jnp.float32)  # (B, DIMS)

    # ---- CrossNetwork: x_{l+1} = x0 * (x_l @ w_l) + b_l + x_l --------------
    xc = x0
    for i in range(N_CROSS):
        w = P("cross_w", i, 1)                                # (1, DIMS)
        b = P("cross_b", i, 1)
        xw = jnp.sum(xc * w, axis=-1, keepdims=True)          # (B,1), VPU + lane reduce
        xc = x0 * xw + b + xc

    # ---- MLP: (Linear + BN(batch stats) + ReLU) x 2, dropout == identity ---
    h = jnp.dot(x0, P("mlp_w1"), preferred_element_type=jnp.float32) + P("mlp_b1")
    h = jnp.maximum(_bn(h, P("bn1_g"), P("bn1_b")), 0.0)      # (B, 64)
    h = jnp.dot(h, P("mlp_w2"), preferred_element_type=jnp.float32) + P("mlp_b2")
    mlp_out = jnp.maximum(_bn(h, P("bn2_g"), P("bn2_b")), 0.0)  # (B, 32)

    # ---- LR on concat([cn_out, mlp_out]) -> (B,1) (VPU mul + lane reduce) --
    x_stack = jnp.concatenate([xc, mlp_out], axis=1)          # (B, 64)
    y = jnp.sum(x_stack * P("lr_w"), axis=-1, keepdims=True) + P("lr_b")

    # ---- emb: y is identical for every domain -> plain lane broadcast ------
    emb = y * jnp.ones((1, OUT_SHAPE), jnp.float32)           # (B, 32)

    # ---- experts + gate logits: ONE packed matmul (B, E*32 + G*E = 108) ----
    eg = jnp.dot(emb, P("eg_w"), preferred_element_type=jnp.float32) + P("eg_b")
    ex = []                                                   # lane-dense (B,32) slices
    for e in range(EXPERT_NUM):
        he = eg[:, e * FCN_OUT:(e + 1) * FCN_OUT]
        ex.append(jnp.maximum(_ln(he, P("ln_g", e, 1), P("ln_b", e, 1)), 0.0))

    # ---- gates: one max + one exp over all 12 logits, 4 group sums ---------
    gl = eg[:, EXPERT_NUM * FCN_OUT:EG_COLS]                  # (B, G*E) = (B, 12)
    pe = jnp.exp(gl - jnp.max(gl, axis=1, keepdims=True))     # single EUP push
    tf = []
    for g in range(G):
        inv = 1.0 / jnp.sum(pe[:, g * EXPERT_NUM:(g + 1) * EXPERT_NUM],
                            axis=1, keepdims=True)            # (B,1)
        acc = jnp.zeros((bsz, FCN_OUT), jnp.float32)
        for e in range(EXPERT_NUM):
            w_ge = pe[:, g * EXPERT_NUM + e:g * EXPERT_NUM + e + 1] * inv
            acc = acc + w_ge * ex[e]                          # 32-lane slice FMA
        tf.append(acc)
    task_cat = jnp.concatenate(tf, axis=1)                    # (B, G*32) = (B, 128)

    # ---- towers: ONE block-diag (128,128) matmul, ONE packed BN/ReLU,
    #      ONE block-structured (128,4) matmul for all logits -----------------
    h1 = jnp.dot(task_cat, P("t1_w"), preferred_element_type=jnp.float32) + P("t1_b")
    h1 = jnp.maximum(_bn(h1, P("tbn_g"), P("tbn_b")), 0.0)    # (B, 128)
    logits = jnp.dot(h1, P("t2_w"), preferred_element_type=jnp.float32) + P("t2_b")
    res = jax.nn.sigmoid(logits)                              # (B, G), col g = tower g

    # ---- domain-wise gather into (B, TASK_NUM); single lane-dense store ----
    cols = []
    for t in range(TASK_NUM):
        colv = jnp.zeros((bsz, 1), jnp.float32)
        for d in range(DOMAIN_NUM):
            g_idx = t * DOMAIN_NUM + d
            colv = jnp.where(masks[d], res[:, g_idx:g_idx + 1], colv)
        cols.append(colv)
    out_ref[...] = jnp.concatenate(cols, axis=1)              # (B, TASK_NUM)


# ------------------------------- wrapper ------------------------------------
def dcn_mmoe_forward(x_idx, packed):
    """x_idx: (NUM_FEATURES, B) int32 feature ids (last row = domain id).
    packed: (P_ROWS, 128) f32 packed parameter buffer."""
    idx_t = x_idx.T.astype(jnp.int32)                         # (B, NUM_FEATURES)
    vmem = pl.BlockSpec(memory_space=pltpu.MemorySpace.VMEM)
    return pl.pallas_call(
        dcn_mmoe_kernel,
        out_shape=jax.ShapeDtypeStruct((B, TASK_NUM), jnp.float32),
        in_specs=[vmem, vmem],                                # exactly 2 inputs -> 2 DMAs
        out_specs=vmem,
    )(idx_t, packed)


dcn_mmoe_forward_jit = jax.jit(dcn_mmoe_forward)


# ----------------------------- parameter init -------------------------------
def init_params(key):
    ks = iter(jax.random.split(key, 64))

    def unif(shape, bound):
        return jax.random.uniform(next(ks), shape, jnp.float32, -bound, bound)

    def lin(shape, fan_in):                                   # torch Linear default init
        return unif(shape, 1.0 / (fan_in ** 0.5))

    ones = lambda s: jnp.ones(s, jnp.float32)
    zeros = lambda s: jnp.zeros(s, jnp.float32)

    vals = {}

    # stacked block-diagonal embedding table (feature f -> rows f*VOCAB..,
    # cols f*EMBED_DIM..), domain feature only uses DOMAIN_NUM rows.
    emb = jnp.zeros((NUM_FEATURES * VOCAB, DIMS), jnp.float32)
    for f in range(NUM_FEATURES):
        vocab_f = DOMAIN_NUM if f == NUM_FEATURES - 1 else VOCAB
        tbl = 0.1 * jax.random.normal(next(ks), (vocab_f, EMBED_DIM), jnp.float32)
        emb = emb.at[f * VOCAB:f * VOCAB + vocab_f,
                     f * EMBED_DIM:(f + 1) * EMBED_DIM].set(tbl)
    vals["emb"] = emb

    # CrossNetwork: per-layer w (Linear(DIMS,1,bias=False)) stored as rows
    vals["cross_w"] = lin((N_CROSS, DIMS), DIMS)
    vals["cross_b"] = zeros((N_CROSS, DIMS))

    # MLP(dims=[64,32])
    vals["mlp_w1"] = lin((DIMS, MLP_DIMS[0]), DIMS)
    vals["mlp_b1"] = lin((1, MLP_DIMS[0]), DIMS)
    vals["bn1_g"], vals["bn1_b"] = ones((1, MLP_DIMS[0])), zeros((1, MLP_DIMS[0]))
    vals["mlp_w2"] = lin((MLP_DIMS[0], MLP_DIMS[1]), MLP_DIMS[0])
    vals["mlp_b2"] = lin((1, MLP_DIMS[1]), MLP_DIMS[0])
    vals["bn2_g"], vals["bn2_b"] = ones((1, MLP_DIMS[1])), zeros((1, MLP_DIMS[1]))

    # LR(DIMS + OUT_SHAPE) -> 1
    vals["lr_w"] = lin((1, DIMS + OUT_SHAPE), DIMS + OUT_SHAPE)
    vals["lr_b"] = zeros((1, 1))

    # experts (MLP_N: Linear + LayerNorm + ReLU) and gates (Linear + Softmax),
    # packed along N into one (32, 108) matrix.
    exp_w = [lin((FCN_IN, FCN_OUT), FCN_IN) for _ in range(EXPERT_NUM)]
    exp_b = [lin((1, FCN_OUT), FCN_IN) for _ in range(EXPERT_NUM)]
    gate_w = [lin((FCN_IN, EXPERT_NUM), FCN_IN) for _ in range(G)]
    gate_b = [lin((1, EXPERT_NUM), FCN_IN) for _ in range(G)]
    vals["eg_w"] = jnp.concatenate(exp_w + gate_w, axis=1)    # (32, 108)
    vals["eg_b"] = jnp.concatenate(exp_b + gate_b, axis=1)    # (1, 108)
    vals["ln_g"] = ones((EXPERT_NUM, FCN_OUT))
    vals["ln_b"] = zeros((EXPERT_NUM, FCN_OUT))

    # towers: Linear(32,32)+BN+ReLU+Linear(32,1), block-packed for one matmul each
    t1 = jnp.zeros((G * FCN_OUT, G * FCN_OUT), jnp.float32)   # block diagonal
    t2 = jnp.zeros((G * FCN_OUT, G), jnp.float32)             # block structured
    t1b, t2b = [], []
    for g in range(G):
        t1 = t1.at[g * FCN_OUT:(g + 1) * FCN_OUT,
                   g * FCN_OUT:(g + 1) * FCN_OUT].set(lin((FCN_OUT, FCN_OUT), FCN_OUT))
        t2 = t2.at[g * FCN_OUT:(g + 1) * FCN_OUT, g:g + 1].set(lin((FCN_OUT, 1), FCN_OUT))
        t1b.append(lin((1, FCN_OUT), FCN_OUT))
        t2b.append(lin((1, 1), FCN_OUT))
    vals["t1_w"] = t1
    vals["t1_b"] = jnp.concatenate(t1b, axis=1)               # (1, 128)
    vals["tbn_g"], vals["tbn_b"] = ones((1, G * FCN_OUT)), zeros((1, G * FCN_OUT))
    vals["t2_w"] = t2
    vals["t2_b"] = jnp.concatenate(t2b, axis=1)               # (1, 4)

    # ---- pack everything into ONE (P_ROWS, 128) f32 buffer -----------------
    packed = jnp.zeros((P_ROWS, P_COLS), jnp.float32)
    for name, (r, n, c) in LAYOUT.items():
        arr = vals[name]
        assert arr.shape == (n, c), (name, arr.shape, (n, c))
        packed = packed.at[r:r + n, 0:c].set(arr)
    return packed


# ----------------------------------- main -----------------------------------
if __name__ == "__main__":
    key = jax.random.PRNGKey(0)
    k_param, k_feat, k_dom = jax.random.split(key, 3)
    packed = init_params(k_param)

    feat_ids = jax.random.randint(k_feat, (NUM_FEATURES - 1, B), 0, VOCAB, dtype=jnp.int32)
    dom_ids = jax.random.randint(k_dom, (1, B), 0, DOMAIN_NUM, dtype=jnp.int32)
    x_idx = jnp.concatenate([feat_ids, dom_ids], axis=0)      # (NUM_FEATURES, B)

    result = jax.block_until_ready(dcn_mmoe_forward_jit(x_idx, packed))

    assert result.shape == (B, TASK_NUM)
    assert bool(jnp.all(jnp.isfinite(result)))
    assert bool(jnp.all((result >= 0.0) & (result <= 1.0)))   # sigmoid outputs
    print("KERNEL_OK")
</pallas_src>

<mosaic_0001>
module attributes {stable_mosaic.version = 11 : i64} {
  func.func @dcn_mmoe_kernel(%arg0: memref<8x8xi32, #tpu.memory_space<vmem>>, %arg1: memref<600x128xf32, #tpu.memory_space<vmem>>, %arg2: memref<8x2xf32, #tpu.memory_space<vmem>>) attributes {dimension_semantics = [], scalar_prefetch = 0 : i64, scratch_operands = 0 : i64, tpu.core_type = #tpu.core_type<tc>} {
    %c0 = arith.constant 0 : index
    %c0_0 = arith.constant 0 : index
    %0 = vector.load %arg0[%c0, %c0_0] : memref<8x8xi32, #tpu.memory_space<vmem>>, vector<8x8xi32>
    %1 = vector.extract_strided_slice %0 {offsets = [0, 7], sizes = [8, 1], strides = [1, 1]} : vector<8x8xi32> to vector<8x1xi32>
    %c0_i32 = arith.constant 0 : i32
    %2 = vector.broadcast %c0_i32 : i32 to vector<8x1xi32>
    %3 = arith.cmpi eq, %1, %2 : vector<8x1xi32>
    %c1_i32 = arith.constant 1 : i32
    %4 = vector.broadcast %c1_i32 : i32 to vector<8x1xi32>
    %5 = arith.cmpi eq, %1, %4 : vector<8x1xi32>
    %6 = tpu.iota {dimensions = array<i32: 1>} : vector<8x8xi32>
    %c10_i32 = arith.constant 10 : i32
    %7 = vector.broadcast %c10_i32 : i32 to vector<8x8xi32>
    %8 = arith.muli %6, %7 : vector<8x8xi32>
    %9 = arith.addi %0, %8 : vector<8x8xi32>
    %10 = tpu.iota {dimensions = array<i32: 1>} : vector<8x80xi32>
    %cst = arith.constant 0.000000e+00 : f32
    %11 = vector.broadcast %cst : f32 to vector<8x80xf32>
    %12 = vector.extract_strided_slice %9 {offsets = [0, 0], sizes = [8, 1], strides = [1, 1]} : vector<8x8xi32> to vector<8x1xi32>
    %13 = vector.broadcast %12 : vector<8x1xi32> to vector<8x80xi32>
    %14 = arith.cmpi eq, %10, %13 : vector<8x80xi32>
    %15 = arith.extui %14 : vector<8x80xi1> to vector<8x80xi32>
    %16 = arith.sitofp %15 : vector<8x80xi32> to vector<8x80xf32>
    %17 = arith.addf %11, %16 : vector<8x80xf32>
    %18 = vector.extract_strided_slice %9 {offsets = [0, 1], sizes = [8, 1], strides = [1, 1]} : vector<8x8xi32> to vector<8x1xi32>
    %19 = vector.broadcast %18 : vector<8x1xi32> to vector<8x80xi32>
    %20 = arith.cmpi eq, %10, %19 : vector<8x80xi32>
    %21 = arith.extui %20 : vector<8x80xi1> to vector<8x80xi32>
    %22 = arith.sitofp %21 : vector<8x80xi32> to vector<8x80xf32>
    %23 = arith.addf %17, %22 : vector<8x80xf32>
    %24 = vector.extract_strided_slice %9 {offsets = [0, 2], sizes = [8, 1], strides = [1, 1]} : vector<8x8xi32> to vector<8x1xi32>
    %25 = vector.broadcast %24 : vector<8x1xi32> to vector<8x80xi32>
    %26 = arith.cmpi eq, %10, %25 : vector<8x80xi32>
    %27 = arith.extui %26 : vector<8x80xi1> to vector<8x80xi32>
    %28 = arith.sitofp %27 : vector<8x80xi32> to vector<8x80xf32>
    %29 = arith.addf %23, %28 : vector<8x80xf32>
    %30 = vector.extract_strided_slice %9 {offsets = [0, 3], sizes = [8, 1], strides = [1, 1]} : vector<8x8xi32> to vector<8x1xi32>
    %31 = vector.broadcast %30 : vector<8x1xi32> to vector<8x80xi32>
    %32 = arith.cmpi eq, %10, %31 : vector<8x80xi32>
    %33 = arith.extui %32 : vector<8x80xi1> to vector<8x80xi32>
    %34 = arith.sitofp %33 : vector<8x80xi32> to vector<8x80xf32>
    %35 = arith.addf %29, %34 : vector<8x80xf32>
    %36 = vector.extract_strided_slice %9 {offsets = [0, 4], sizes = [8, 1], strides = [1, 1]} : vector<8x8xi32> to vector<8x1xi32>
    %37 = vector.broadcast %36 : vector<8x1xi32> to vector<8x80xi32>
    %38 = arith.cmpi eq, %10, %37 : vector<8x80xi32>
    %39 = arith.extui %38 : vector<8x80xi1> to vector<8x80xi32>
    %40 = arith.sitofp %39 : vector<8x80xi32> to vector<8x80xf32>
    %41 = arith.addf %35, %40 : vector<8x80xf32>
    %42 = vector.extract_strided_slice %9 {offsets = [0, 5], sizes = [8, 1], strides = [1, 1]} : vector<8x8xi32> to vector<8x1xi32>
    %43 = vector.broadcast %42 : vector<8x1xi32> to vector<8x80xi32>
    %44 = arith.cmpi eq, %10, %43 : vector<8x80xi32>
    %45 = arith.extui %44 : vector<8x80xi1> to vector<8x80xi32>
    %46 = arith.sitofp %45 : vector<8x80xi32> to vector<8x80xf32>
    %47 = arith.addf %41, %46 : vector<8x80xf32>
    %48 = vector.extract_strided_slice %9 {offsets = [0, 6], sizes = [8, 1], strides = [1, 1]} : vector<8x8xi32> to vector<8x1xi32>
    %49 = vector.broadcast %48 : vector<8x1xi32> to vector<8x80xi32>
    %50 = arith.cmpi eq, %10, %49 : vector<8x80xi32>
    %51 = arith.extui %50 : vector<8x80xi1> to vector<8x80xi32>
    %52 = arith.sitofp %51 : vector<8x80xi32> to vector<8x80xf32>
    %53 = arith.addf %47, %52 : vector<8x80xf32>
    %54 = vector.extract_strided_slice %9 {offsets = [0, 7], sizes = [8, 1], strides = [1, 1]} : vector<8x8xi32> to vector<8x1xi32>
    %55 = vector.broadcast %54 : vector<8x1xi32> to vector<8x80xi32>
    %56 = arith.cmpi eq, %10, %55 : vector<8x80xi32>
    %57 = arith.extui %56 : vector<8x80xi1> to vector<8x80xi32>
    %58 = arith.sitofp %57 : vector<8x80xi32> to vector<8x80xf32>
    %59 = arith.addf %53, %58 : vector<8x80xf32>
    %c0_1 = arith.constant 0 : index
    %c0_2 = arith.constant 0 : index
    %60 = vector.load %arg1[%c0_1, %c0_2] : memref<600x128xf32, #tpu.memory_space<vmem>>, vector<80x32xf32>
    %cst_3 = arith.constant dense<0.000000e+00> : vector<8x32xf32>
    %61 = tpu.matmul %59, %60, %cst_3 {dimension_numbers = #tpu.dot_dimension_numbers<[1], [0], [0], [1], [0, 0, 1, 1], [], []>} : vector<8x80xf32>, vector<80x32xf32>, vector<8x32xf32> -> vector<8x32xf32>
    %c80 = arith.constant 80 : index
    %c0_4 = arith.constant 0 : index
    %62 = vector.load %arg1[%c80, %c0_4] : memref<600x128xf32, #tpu.memory_space<vmem>>, vector<1x32xf32>
    %c88 = arith.constant 88 : index
    %c0_5 = arith.constant 0 : index
    %63 = vector.load %arg1[%c88, %c0_5] : memref<600x128xf32, #tpu.memory_space<vmem>>, vector<1x32xf32>
    %64 = vector.broadcast %62 : vector<1x32xf32> to vector<8x32xf32>
    %65 = arith.mulf %61, %64 : vector<8x32xf32>
    %cst_6 = arith.constant dense<0.000000e+00> : vector<8xf32>
    %66 = vector.multi_reduction <add>, %65, %cst_6 [1] : vector<8x32xf32> to vector<8xf32>
    %67 = vector.shape_cast %66 : vector<8xf32> to vector<8x1xf32>
    %68 = vector.broadcast %67 : vector<8x1xf32> to vector<8x32xf32>
    %69 = arith.mulf %61, %68 : vector<8x32xf32>
    %70 = vector.broadcast %63 : vector<1x32xf32> to vector<8x32xf32>
    %71 = arith.addf %69, %70 : vector<8x32xf32>
    %72 = arith.addf %71, %61 : vector<8x32xf32>
    %c81 = arith.constant 81 : index
    %c0_7 = arith.constant 0 : index
    %73 = vector.load %arg1[%c81, %c0_7] : memref<600x128xf32, #tpu.memory_space<vmem>>, vector<1x32xf32>
    %c89 = arith.constant 89 : index
    %c0_8 = arith.constant 0 : index
    %74 = vector.load %arg1[%c89, %c0_8] : memref<600x128xf32, #tpu.memory_space<vmem>>, vector<1x32xf32>
    %75 = vector.broadcast %73 : vector<1x32xf32> to vector<8x32xf32>
    %76 = arith.mulf %72, %75 : vector<8x32xf32>
    %cst_9 = arith.constant dense<0.000000e+00> : vector<8xf32>
    %77 = vector.multi_reduction <add>, %76, %cst_9 [1] : vector<8x32xf32> to vector<8xf32>
    %78 = vector.shape_cast %77 : vector<8xf32> to vector<8x1xf32>
    %79 = vector.broadcast %78 : vector<8x1xf32> to vector<8x32xf32>
    %80 = arith.mulf %61, %79 : vector<8x32xf32>
    %81 = vector.broadcast %74 : vector<1x32xf32> to vector<8x32xf32>
    %82 = arith.addf %80, %81 : vector<8x32xf32>
    %83 = arith.addf %82, %72 : vector<8x32xf32>
    %c96 = arith.constant 96 : index
    %c0_10 = arith.constant 0 : index
    %84 = vector.load %arg1[%c96, %c0_10] : memref<600x128xf32, #tpu.memory_space<vmem>>, vector<32x64xf32>
    %cst_11 = arith.constant dense<0.000000e+00> : vector<8x64xf32>
    %85 = tpu.matmul %61, %84, %cst_11 {dimension_numbers = #tpu.dot_dimension_numbers<[1], [0], [0], [1], [0, 0, 1, 1], [], []>} : vector<8x32xf32>, vector<32x64xf32>, vector<8x64xf32> -> vector<8x64xf32>
    %c128 = arith.constant 128 : index
    %c0_12 = arith.constant 0 : index
    %86 = vector.load %arg1[%c128, %c0_12] : memref<600x128xf32, #tpu.memory_space<vmem>>, vector<1x64xf32>
    %87 = vector.broadcast %86 : vector<1x64xf32> to vector<8x64xf32>
    %88 = arith.addf %85, %87 : vector<8x64xf32>
    %c136 = arith.constant 136 : index
    %c0_13 = arith.constant 0 : index
    %89 = vector.load %arg1[%c136, %c0_13] : memref<600x128xf32, #tpu.memory_space<vmem>>, vector<1x64xf32>
    %c144 = arith.constant 144 : index
    %c0_14 = arith.constant 0 : index
    %90 = vector.load %arg1[%c144, %c0_14] : memref<600x128xf32, #tpu.memory_space<vmem>>, vector<1x64xf32>
    %cst_15 = arith.constant dense<0.000000e+00> : vector<64xf32>
    %91 = vector.multi_reduction <add>, %88, %cst_15 [0] : vector<8x64xf32> to vector<64xf32>
    %92 = vector.shape_cast %91 : vector<64xf32> to vector<1x64xf32>
    %cst_16 = arith.constant 8.000000e+00 : f32
    %93 = vector.broadcast %cst_16 : f32 to vector<1x64xf32>
    %94 = arith.divf %92, %93 : vector<1x64xf32>
    %95 = vector.broadcast %94 : vector<1x64xf32> to vector<8x64xf32>
    %96 = arith.subf %88, %95 : vector<8x64xf32>
    %97 = arith.mulf %96, %96 : vector<8x64xf32>
    %cst_17 = arith.constant dense<0.000000e+00> : vector<64xf32>
    %98 = vector.multi_reduction <add>, %97, %cst_17 [0] : vector<8x64xf32> to vector<64xf32>
    %99 = vector.shape_cast %98 : vector<64xf32> to vector<1x64xf32>
    %cst_18 = arith.constant 8.000000e+00 : f32
    %100 = vector.broadcast %cst_18 : f32 to vector<1x64xf32>
    %101 = arith.divf %99, %100 : vector<1x64xf32>
    %102 = vector.broadcast %94 : vector<1x64xf32> to vector<8x64xf32>
    %103 = arith.subf %88, %102 : vector<8x64xf32>
    %cst_19 = arith.constant 9.99999974E-6 : f32
    %104 = vector.broadcast %cst_19 : f32 to vector<1x64xf32>
    %105 = arith.addf %101, %104 : vector<1x64xf32>
    %106 = math.rsqrt %105 : vector<1x64xf32>
    %107 = vector.broadcast %106 : vector<1x64xf32> to vector<8x64xf32>
    %108 = arith.mulf %103, %107 : vector<8x64xf32>
    %109 = vector.broadcast %89 : vector<1x64xf32> to vector<8x64xf32>
    %110 = arith.mulf %108, %109 : vector<8x64xf32>
    %111 = vector.broadcast %90 : vector<1x64xf32> to vector<8x64xf32>
    %112 = arith.addf %110, %111 : vector<8x64xf32>
    %cst_20 = arith.constant 0.000000e+00 : f32
    %113 = vector.broadcast %cst_20 : f32 to vector<8x64xf32>
    %114 = arith.maximumf %112, %113 : vector<8x64xf32>
    %c152 = arith.constant 152 : index
    %c0_21 = arith.constant 0 : index
    %115 = vector.load %arg1[%c152, %c0_21] : memref<600x128xf32, #tpu.memory_space<vmem>>, vector<64x32xf32>
    %cst_22 = arith.constant dense<0.000000e+00> : vector<8x32xf32>
    %116 = tpu.matmul %114, %115, %cst_22 {dimension_numbers = #tpu.dot_dimension_numbers<[1], [0], [0], [1], [0, 0, 1, 1], [], []>} : vector<8x64xf32>, vector<64x32xf32>, vector<8x32xf32> -> vector<8x32xf32>
    %c216 = arith.constant 216 : index
    %c0_23 = arith.constant 0 : index
    %117 = vector.load %arg1[%c216, %c0_23] : memref<600x128xf32, #tpu.memory_space<vmem>>, vector<1x32xf32>
    %118 = vector.broadcast %117 : vector<1x32xf32> to vector<8x32xf32>
    %119 = arith.addf %116, %118 : vector<8x32xf32>
    %c224 = arith.constant 224 : index
    %c0_24 = arith.constant 0 : index
    %120 = vector.load %arg1[%c224, %c0_24] : memref<600x128xf32, #tpu.memory_space<vmem>>, vector<1x32xf32>
    %c232 = arith.constant 232 : index
    %c0_25 = arith.constant 0 : index
    %121 = vector.load %arg1[%c232, %c0_25] : memref<600x128xf32, #tpu.memory_space<vmem>>, vector<1x32xf32>
    %cst_26 = arith.constant dense<0.000000e+00> : vector<32xf32>
    %122 = vector.multi_reduction <add>, %119, %cst_26 [0] : vector<8x32xf32> to vector<32xf32>
    %123 = vector.shape_cast %122 : vector<32xf32> to vector<1x32xf32>
    %cst_27 = arith.constant 8.000000e+00 : f32
    %124 = vector.broadcast %cst_27 : f32 to vector<1x32xf32>
    %125 = arith.divf %123, %124 : vector<1x32xf32>
    %126 = vector.broadcast %125 : vector<1x32xf32> to vector<8x32xf32>
    %127 = arith.subf %119, %126 : vector<8x32xf32>
    %128 = arith.mulf %127, %127 : vector<8x32xf32>
    %cst_28 = arith.constant dense<0.000000e+00> : vector<32xf32>
    %129 = vector.multi_reduction <add>, %128, %cst_28 [0] : vector<8x32xf32> to vector<32xf32>
    %130 = vector.shape_cast %129 : vector<32xf32> to vector<1x32xf32>
    %cst_29 = arith.constant 8.000000e+00 : f32
    %131 = vector.broadcast %cst_29 : f32 to vector<1x32xf32>
    %132 = arith.divf %130, %131 : vector<1x32xf32>
    %133 = vector.broadcast %125 : vector<1x32xf32> to vector<8x32xf32>
    %134 = arith.subf %119, %133 : vector<8x32xf32>
    %cst_30 = arith.constant 9.99999974E-6 : f32
    %135 = vector.broadcast %cst_30 : f32 to vector<1x32xf32>
    %136 = arith.addf %132, %135 : vector<1x32xf32>
    %137 = math.rsqrt %136 : vector<1x32xf32>
    %138 = vector.broadcast %137 : vector<1x32xf32> to vector<8x32xf32>
    %139 = arith.mulf %134, %138 : vector<8x32xf32>
    %140 = vector.broadcast %120 : vector<1x32xf32> to vector<8x32xf32>
    %141 = arith.mulf %139, %140 : vector<8x32xf32>
    %142 = vector.broadcast %121 : vector<1x32xf32> to vector<8x32xf32>
    %143 = arith.addf %141, %142 : vector<8x32xf32>
    %cst_31 = arith.constant 0.000000e+00 : f32
    %144 = vector.broadcast %cst_31 : f32 to vector<8x32xf32>
    %145 = arith.maximumf %143, %144 : vector<8x32xf32>
    %146 = tpu.concatenate %83, %145 in 1 : vector<8x32xf32>, vector<8x32xf32> -> vector<8x64xf32>
    %c240 = arith.constant 240 : index
    %c0_32 = arith.constant 0 : index
    %147 = vector.load %arg1[%c240, %c0_32] : memref<600x128xf32, #tpu.memory_space<vmem>>, vector<1x64xf32>
    %148 = vector.broadcast %147 : vector<1x64xf32> to vector<8x64xf32>
    %149 = arith.mulf %146, %148 : vector<8x64xf32>
    %cst_33 = arith.constant dense<0.000000e+00> : vector<8xf32>
    %150 = vector.multi_reduction <add>, %149, %cst_33 [1] : vector<8x64xf32> to vector<8xf32>
    %151 = vector.shape_cast %150 : vector<8xf32> to vector<8x1xf32>
    %c248 = arith.constant 248 : index
    %c0_34 = arith.constant 0 : index
    %152 = vector.load %arg1[%c248, %c0_34] : memref<600x128xf32, #tpu.memory_space<vmem>>, vector<1x1xf32>
    %153 = vector.broadcast %152 : vector<1x1xf32> to vector<8x1xf32>
    %154 = arith.addf %151, %153 : vector<8x1xf32>
    %cst_35 = arith.constant 1.000000e+00 : f32
    %155 = vector.broadcast %cst_35 : f32 to vector<1x32xf32>
    %156 = vector.broadcast %154 : vector<8x1xf32> to vector<8x32xf32>
    %157 = vector.broadcast %155 : vector<1x32xf32> to vector<8x32xf32>
    %158 = arith.mulf %156, %157 : vector<8x32xf32>
    %c256 = arith.constant 256 : index
    %c0_36 = arith.constant 0 : index
    %159 = vector.load %arg1[%c256, %c0_36] : memref<600x128xf32, #tpu.memory_space<vmem>>, vector<32x108xf32>
    %cst_37 = arith.constant dense<0.000000e+00> : vector<8x108xf32>
    %160 = tpu.matmul %158, %159, %cst_37 {dimension_numbers = #tpu.dot_dimension_numbers<[1], [0], [0], [1], [0, 0, 1, 1], [], []>} : vector<8x32xf32>, vector<32x108xf32>, vector<8x108xf32> -> vector<8x108xf32>
    %c288 = arith.constant 288 : index
    %c0_38 = arith.constant 0 : index
    %161 = vector.load %arg1[%c288, %c0_38] : memref<600x128xf32, #tpu.memory_space<vmem>>, vector<1x108xf32>
    %162 = vector.broadcast %161 : vector<1x108xf32> to vector<8x108xf32>
    %163 = arith.addf %160, %162 : vector<8x108xf32>
    %164 = vector.extract_strided_slice %163 {offsets = [0, 0], sizes = [8, 32], strides = [1, 1]} : vector<8x108xf32> to vector<8x32xf32>
    %c296 = arith.constant 296 : index
    %c0_39 = arith.constant 0 : index
    %165 = vector.load %arg1[%c296, %c0_39] : memref<600x128xf32, #tpu.memory_space<vmem>>, vector<1x32xf32>
    %c304 = arith.constant 304 : index
    %c0_40 = arith.constant 0 : index
    %166 = vector.load %arg1[%c304, %c0_40] : memref<600x128xf32, #tpu.memory_space<vmem>>, vector<1x32xf32>
    %cst_41 = arith.constant dense<0.000000e+00> : vector<8xf32>
    %167 = vector.multi_reduction <add>, %164, %cst_41 [1] : vector<8x32xf32> to vector<8xf32>
    %168 = vector.shape_cast %167 : vector<8xf32> to vector<8x1xf32>
    %cst_42 = arith.constant 3.200000e+01 : f32
    %169 = vector.broadcast %cst_42 : f32 to vector<8x1xf32>
    %170 = arith.divf %168, %169 : vector<8x1xf32>
    %171 = vector.broadcast %170 : vector<8x1xf32> to vector<8x32xf32>
    %172 = arith.subf %164, %171 : vector<8x32xf32>
    %173 = arith.mulf %172, %172 : vector<8x32xf32>
    %cst_43 = arith.constant dense<0.000000e+00> : vector<8xf32>
    %174 = vector.multi_reduction <add>, %173, %cst_43 [1] : vector<8x32xf32> to vector<8xf32>
    %175 = vector.shape_cast %174 : vector<8xf32> to vector<8x1xf32>
    %cst_44 = arith.constant 3.200000e+01 : f32
    %176 = vector.broadcast %cst_44 : f32 to vector<8x1xf32>
    %177 = arith.divf %175, %176 : vector<8x1xf32>
    %178 = vector.broadcast %170 : vector<8x1xf32> to vector<8x32xf32>
    %179 = arith.subf %164, %178 : vector<8x32xf32>
    %cst_45 = arith.constant 9.99999974E-6 : f32
    %180 = vector.broadcast %cst_45 : f32 to vector<8x1xf32>
    %181 = arith.addf %177, %180 : vector<8x1xf32>
    %182 = math.rsqrt %181 : vector<8x1xf32>
    %183 = vector.broadcast %182 : vector<8x1xf32> to vector<8x32xf32>
    %184 = arith.mulf %179, %183 : vector<8x32xf32>
    %185 = vector.broadcast %165 : vector<1x32xf32> to vector<8x32xf32>
    %186 = arith.mulf %184, %185 : vector<8x32xf32>
    %187 = vector.broadcast %166 : vector<1x32xf32> to vector<8x32xf32>
    %188 = arith.addf %186, %187 : vector<8x32xf32>
    %cst_46 = arith.constant 0.000000e+00 : f32
    %189 = vector.broadcast %cst_46 : f32 to vector<8x32xf32>
    %190 = arith.maximumf %188, %189 : vector<8x32xf32>
    %191 = vector.extract_strided_slice %163 {offsets = [0, 32], sizes = [8, 32], strides = [1, 1]} : vector<8x108xf32> to vector<8x32xf32>
    %c297 = arith.constant 297 : index
    %c0_47 = arith.constant 0 : index
    %192 = vector.load %arg1[%c297, %c0_47] : memref<600x128xf32, #tpu.memory_space<vmem>>, vector<1x32xf32>
    %c305 = arith.constant 305 : index
    %c0_48 = arith.constant 0 : index
    %193 = vector.load %arg1[%c305, %c0_48] : memref<600x128xf32, #tpu.memory_space<vmem>>, vector<1x32xf32>
    %cst_49 = arith.constant dense<0.000000e+00> : vector<8xf32>
    %194 = vector.multi_reduction <add>, %191, %cst_49 [1] : vector<8x32xf32> to vector<8xf32>
    %195 = vector.shape_cast %194 : vector<8xf32> to vector<8x1xf32>
    %cst_50 = arith.constant 3.200000e+01 : f32
    %196 = vector.broadcast %cst_50 : f32 to vector<8x1xf32>
    %197 = arith.divf %195, %196 : vector<8x1xf32>
    %198 = vector.broadcast %197 : vector<8x1xf32> to vector<8x32xf32>
    %199 = arith.subf %191, %198 : vector<8x32xf32>
    %200 = arith.mulf %199, %199 : vector<8x32xf32>
    %cst_51 = arith.constant dense<0.000000e+00> : vector<8xf32>
    %201 = vector.multi_reduction <add>, %200, %cst_51 [1] : vector<8x32xf32> to vector<8xf32>
    %202 = vector.shape_cast %201 : vector<8xf32> to vector<8x1xf32>
    %cst_52 = arith.constant 3.200000e+01 : f32
    %203 = vector.broadcast %cst_52 : f32 to vector<8x1xf32>
    %204 = arith.divf %202, %203 : vector<8x1xf32>
    %205 = vector.broadcast %197 : vector<8x1xf32> to vector<8x32xf32>
    %206 = arith.subf %191, %205 : vector<8x32xf32>
    %cst_53 = arith.constant 9.99999974E-6 : f32
    %207 = vector.broadcast %cst_53 : f32 to vector<8x1xf32>
    %208 = arith.addf %204, %207 : vector<8x1xf32>
    %209 = math.rsqrt %208 : vector<8x1xf32>
    %210 = vector.broadcast %209 : vector<8x1xf32> to vector<8x32xf32>
    %211 = arith.mulf %206, %210 : vector<8x32xf32>
    %212 = vector.broadcast %192 : vector<1x32xf32> to vector<8x32xf32>
    %213 = arith.mulf %211, %212 : vector<8x32xf32>
    %214 = vector.broadcast %193 : vector<1x32xf32> to vector<8x32xf32>
    %215 = arith.addf %213, %214 : vector<8x32xf32>
    %cst_54 = arith.constant 0.000000e+00 : f32
    %216 = vector.broadcast %cst_54 : f32 to vector<8x32xf32>
    %217 = arith.maximumf %215, %216 : vector<8x32xf32>
    %218 = vector.extract_strided_slice %163 {offsets = [0, 64], sizes = [8, 32], strides = [1, 1]} : vector<8x108xf32> to vector<8x32xf32>
    %c298 = arith.constant 298 : index
    %c0_55 = arith.constant 0 : index
    %219 = vector.load %arg1[%c298, %c0_55] : memref<600x128xf32, #tpu.memory_space<vmem>>, vector<1x32xf32>
    %c306 = arith.constant 306 : index
    %c0_56 = arith.constant 0 : index
    %220 = vector.load %arg1[%c306, %c0_56] : memref<600x128xf32, #tpu.memory_space<vmem>>, vector<1x32xf32>
    %cst_57 = arith.constant dense<0.000000e+00> : vector<8xf32>
    %221 = vector.multi_reduction <add>, %218, %cst_57 [1] : vector<8x32xf32> to vector<8xf32>
    %222 = vector.shape_cast %221 : vector<8xf32> to vector<8x1xf32>
    %cst_58 = arith.constant 3.200000e+01 : f32
    %223 = vector.broadcast %cst_58 : f32 to vector<8x1xf32>
    %224 = arith.divf %222, %223 : vector<8x1xf32>
    %225 = vector.broadcast %224 : vector<8x1xf32> to vector<8x32xf32>
    %226 = arith.subf %218, %225 : vector<8x32xf32>
    %227 = arith.mulf %226, %226 : vector<8x32xf32>
    %cst_59 = arith.constant dense<0.000000e+00> : vector<8xf32>
    %228 = vector.multi_reduction <add>, %227, %cst_59 [1] : vector<8x32xf32> to vector<8xf32>
    %229 = vector.shape_cast %228 : vector<8xf32> to vector<8x1xf32>
    %cst_60 = arith.constant 3.200000e+01 : f32
    %230 = vector.broadcast %cst_60 : f32 to vector<8x1xf32>
    %231 = arith.divf %229, %230 : vector<8x1xf32>
    %232 = vector.broadcast %224 : vector<8x1xf32> to vector<8x32xf32>
    %233 = arith.subf %218, %232 : vector<8x32xf32>
    %cst_61 = arith.constant 9.99999974E-6 : f32
    %234 = vector.broadcast %cst_61 : f32 to vector<8x1xf32>
    %235 = arith.addf %231, %234 : vector<8x1xf32>
    %236 = math.rsqrt %235 : vector<8x1xf32>
    %237 = vector.broadcast %236 : vector<8x1xf32> to vector<8x32xf32>
    %238 = arith.mulf %233, %237 : vector<8x32xf32>
    %239 = vector.broadcast %219 : vector<1x32xf32> to vector<8x32xf32>
    %240 = arith.mulf %238, %239 : vector<8x32xf32>
    %241 = vector.broadcast %220 : vector<1x32xf32> to vector<8x32xf32>
    %242 = arith.addf %240, %241 : vector<8x32xf32>
    %cst_62 = arith.constant 0.000000e+00 : f32
    %243 = vector.broadcast %cst_62 : f32 to vector<8x32xf32>
    %244 = arith.maximumf %242, %243 : vector<8x32xf32>
    %245 = vector.extract_strided_slice %163 {offsets = [0, 96], sizes = [8, 12], strides = [1, 1]} : vector<8x108xf32> to vector<8x12xf32>
    %cst_63 = arith.constant dense<0xFF800000> : vector<8xf32>
    %246 = vector.multi_reduction <maximumf>, %245, %cst_63 [1] : vector<8x12xf32> to vector<8xf32>
    %247 = vector.shape_cast %246 : vector<8xf32> to vector<8x1xf32>
    %248 = vector.broadcast %247 : vector<8x1xf32> to vector<8x12xf32>
    %249 = arith.subf %245, %248 : vector<8x12xf32>
    %250 = math.exp %249 : vector<8x12xf32>
    %251 = vector.extract_strided_slice %250 {offsets = [0, 0], sizes = [8, 3], strides = [1, 1]} : vector<8x12xf32> to vector<8x3xf32>
    %cst_64 = arith.constant dense<0.000000e+00> : vector<8xf32>
    %252 = vector.multi_reduction <add>, %251, %cst_64 [1] : vector<8x3xf32> to vector<8xf32>
    %253 = vector.shape_cast %252 : vector<8xf32> to vector<8x1xf32>
    %cst_65 = arith.constant 1.000000e+00 : f32
    %254 = vector.broadcast %cst_65 : f32 to vector<8x1xf32>
    %255 = arith.divf %254, %253 : vector<8x1xf32>
    %cst_66 = arith.constant 0.000000e+00 : f32
    %256 = vector.broadcast %cst_66 : f32 to vector<8x32xf32>
    %257 = vector.extract_strided_slice %250 {offsets = [0, 0], sizes = [8, 1], strides = [1, 1]} : vector<8x12xf32> to vector<8x1xf32>
    %258 = arith.mulf %257, %255 : vector<8x1xf32>
    %259 = vector.broadcast %258 : vector<8x1xf32> to vector<8x32xf32>
    %260 = arith.mulf %259, %190 : vector<8x32xf32>
    %261 = arith.addf %256, %260 : vector<8x32xf32>
    %262 = vector.extract_strided_slice %250 {offsets = [0, 1], sizes = [8, 1], strides = [1, 1]} : vector<8x12xf32> to vector<8x1xf32>
    %263 = arith.mulf %262, %255 : vector<8x1xf32>
    %264 = vector.broadcast %263 : vector<8x1xf32> to vector<8x32xf32>
    %265 = arith.mulf %264, %217 : vector<8x32xf32>
    %266 = arith.addf %261, %265 : vector<8x32xf32>
    %267 = vector.extract_strided_slice %250 {offsets = [0, 2], sizes = [8, 1], strides = [1, 1]} : vector<8x12xf32> to vector<8x1xf32>
    %268 = arith.mulf %267, %255 : vector<8x1xf32>
    %269 = vector.broadcast %268 : vector<8x1xf32> to vector<8x32xf32>
    %270 = arith.mulf %269, %244 : vector<8x32xf32>
    %271 = arith.addf %266, %270 : vector<8x32xf32>
    %272 = vector.extract_strided_slice %250 {offsets = [0, 3], sizes = [8, 3], strides = [1, 1]} : vector<8x12xf32> to vector<8x3xf32>
    %cst_67 = arith.constant dense<0.000000e+00> : vector<8xf32>
    %273 = vector.multi_reduction <add>, %272, %cst_67 [1] : vector<8x3xf32> to vector<8xf32>
    %274 = vector.shape_cast %273 : vector<8xf32> to vector<8x1xf32>
    %cst_68 = arith.constant 1.000000e+00 : f32
    %275 = vector.broadcast %cst_68 : f32 to vector<8x1xf32>
    %276 = arith.divf %275, %274 : vector<8x1xf32>
    %cst_69 = arith.constant 0.000000e+00 : f32
    %277 = vector.broadcast %cst_69 : f32 to vector<8x32xf32>
    %278 = vector.extract_strided_slice %250 {offsets = [0, 3], sizes = [8, 1], strides = [1, 1]} : vector<8x12xf32> to vector<8x1xf32>
    %279 = arith.mulf %278, %276 : vector<8x1xf32>
    %280 = vector.broadcast %279 : vector<8x1xf32> to vector<8x32xf32>
    %281 = arith.mulf %280, %190 : vector<8x32xf32>
    %282 = arith.addf %277, %281 : vector<8x32xf32>
    %283 = vector.extract_strided_slice %250 {offsets = [0, 4], sizes = [8, 1], strides = [1, 1]} : vector<8x12xf32> to vector<8x1xf32>
    %284 = arith.mulf %283, %276 : vector<8x1xf32>
    %285 = vector.broadcast %284 : vector<8x1xf32> to vector<8x32xf32>
    %286 = arith.mulf %285, %217 : vector<8x32xf32>
    %287 = arith.addf %282, %286 : vector<8x32xf32>
    %288 = vector.extract_strided_slice %250 {offsets = [0, 5], sizes = [8, 1], strides = [1, 1]} : vector<8x12xf32> to vector<8x1xf32>
    %289 = arith.mulf %288, %276 : vector<8x1xf32>
    %290 = vector.broadcast %289 : vector<8x1xf32> to vector<8x32xf32>
    %291 = arith.mulf %290, %244 : vector<8x32xf32>
    %292 = arith.addf %287, %291 : vector<8x32xf32>
    %293 = vector.extract_strided_slice %250 {offsets = [0, 6], sizes = [8, 3], strides = [1, 1]} : vector<8x12xf32> to vector<8x3xf32>
    %cst_70 = arith.constant dense<0.000000e+00> : vector<8xf32>
    %294 = vector.multi_reduction <add>, %293, %cst_70 [1] : vector<8x3xf32> to vector<8xf32>
    %295 = vector.shape_cast %294 : vector<8xf32> to vector<8x1xf32>
    %cst_71 = arith.constant 1.000000e+00 : f32
    %296 = vector.broadcast %cst_71 : f32 to vector<8x1xf32>
    %297 = arith.divf %296, %295 : vector<8x1xf32>
    %cst_72 = arith.constant 0.000000e+00 : f32
    %298 = vector.broadcast %cst_72 : f32 to vector<8x32xf32>
    %299 = vector.extract_strided_slice %250 {offsets = [0, 6], sizes = [8, 1], strides = [1, 1]} : vector<8x12xf32> to vector<8x1xf32>
    %300 = arith.mulf %299, %297 : vector<8x1xf32>
    %301 = vector.broadcast %300 : vector<8x1xf32> to vector<8x32xf32>
    %302 = arith.mulf %301, %190 : vector<8x32xf32>
    %303 = arith.addf %298, %302 : vector<8x32xf32>
    %304 = vector.extract_strided_slice %250 {offsets = [0, 7], sizes = [8, 1], strides = [1, 1]} : vector<8x12xf32> to vector<8x1xf32>
    %305 = arith.mulf %304, %297 : vector<8x1xf32>
    %306 = vector.broadcast %305 : vector<8x1xf32> to vector<8x32xf32>
    %307 = arith.mulf %306, %217 : vector<8x32xf32>
    %308 = arith.addf %303, %307 : vector<8x32xf32>
    %309 = vector.extract_strided_slice %250 {offsets = [0, 8], sizes = [8, 1], strides = [1, 1]} : vector<8x12xf32> to vector<8x1xf32>
    %310 = arith.mulf %309, %297 : vector<8x1xf32>
    %311 = vector.broadcast %310 : vector<8x1xf32> to vector<8x32xf32>
    %312 = arith.mulf %311, %244 : vector<8x32xf32>
    %313 = arith.addf %308, %312 : vector<8x32xf32>
    %314 = vector.extract_strided_slice %250 {offsets = [0, 9], sizes = [8, 3], strides = [1, 1]} : vector<8x12xf32> to vector<8x3xf32>
    %cst_73 = arith.constant dense<0.000000e+00> : vector<8xf32>
    %315 = vector.multi_reduction <add>, %314, %cst_73 [1] : vector<8x3xf32> to vector<8xf32>
    %316 = vector.shape_cast %315 : vector<8xf32> to vector<8x1xf32>
    %cst_74 = arith.constant 1.000000e+00 : f32
    %317 = vector.broadcast %cst_74 : f32 to vector<8x1xf32>
    %318 = arith.divf %317, %316 : vector<8x1xf32>
    %cst_75 = arith.constant 0.000000e+00 : f32
    %319 = vector.broadcast %cst_75 : f32 to vector<8x32xf32>
    %320 = vector.extract_strided_slice %250 {offsets = [0, 9], sizes = [8, 1], strides = [1, 1]} : vector<8x12xf32> to vector<8x1xf32>
    %321 = arith.mulf %320, %318 : vector<8x1xf32>
    %322 = vector.broadcast %321 : vector<8x1xf32> to vector<8x32xf32>
    %323 = arith.mulf %322, %190 : vector<8x32xf32>
    %324 = arith.addf %319, %323 : vector<8x32xf32>
    %325 = vector.extract_strided_slice %250 {offsets = [0, 10], sizes = [8, 1], strides = [1, 1]} : vector<8x12xf32> to vector<8x1xf32>
    %326 = arith.mulf %325, %318 : vector<8x1xf32>
    %327 = vector.broadcast %326 : vector<8x1xf32> to vector<8x32xf32>
    %328 = arith.mulf %327, %217 : vector<8x32xf32>
    %329 = arith.addf %324, %328 : vector<8x32xf32>
    %330 = vector.extract_strided_slice %250 {offsets = [0, 11], sizes = [8, 1], strides = [1, 1]} : vector<8x12xf32> to vector<8x1xf32>
    %331 = arith.mulf %330, %318 : vector<8x1xf32>
    %332 = vector.broadcast %331 : vector<8x1xf32> to vector<8x32xf32>
    %333 = arith.mulf %332, %244 : vector<8x32xf32>
    %334 = arith.addf %329, %333 : vector<8x32xf32>
    %335 = tpu.concatenate %271, %292, %313, %334 in 1 : vector<8x32xf32>, vector<8x32xf32>, vector<8x32xf32>, vector<8x32xf32> -> vector<8x128xf32>
    %c312 = arith.constant 312 : index
    %c0_76 = arith.constant 0 : index
    %336 = vector.load %arg1[%c312, %c0_76] : memref<600x128xf32, #tpu.memory_space<vmem>>, vector<128x128xf32>
    %cst_77 = arith.constant dense<0.000000e+00> : vector<8x128xf32>
    %337 = tpu.matmul %335, %336, %cst_77 {dimension_numbers = #tpu.dot_dimension_numbers<[1], [0], [0], [1], [0, 0, 1, 1], [], []>} : vector<8x128xf32>, vector<128x128xf32>, vector<8x128xf32> -> vector<8x128xf32>
    %c440 = arith.constant 440 : index
    %c0_78 = arith.constant 0 : index
    %338 = vector.load %arg1[%c440, %c0_78] : memref<600x128xf32, #tpu.memory_space<vmem>>, vector<1x128xf32>
    %339 = vector.broadcast %338 : vector<1x128xf32> to vector<8x128xf32>
    %340 = arith.addf %337, %339 : vector<8x128xf32>
    %c448 = arith.constant 448 : index
    %c0_79 = arith.constant 0 : index
    %341 = vector.load %arg1[%c448, %c0_79] : memref<600x128xf32, #tpu.memory_space<vmem>>, vector<1x128xf32>
    %c456 = arith.constant 456 : index
    %c0_80 = arith.constant 0 : index
    %342 = vector.load %arg1[%c456, %c0_80] : memref<600x128xf32, #tpu.memory_space<vmem>>, vector<1x128xf32>
    %cst_81 = arith.constant dense<0.000000e+00> : vector<128xf32>
    %343 = vector.multi_reduction <add>, %340, %cst_81 [0] : vector<8x128xf32> to vector<128xf32>
    %344 = vector.shape_cast %343 : vector<128xf32> to vector<1x128xf32>
    %cst_82 = arith.constant 8.000000e+00 : f32
    %345 = vector.broadcast %cst_82 : f32 to vector<1x128xf32>
    %346 = arith.divf %344, %345 : vector<1x128xf32>
    %347 = vector.broadcast %346 : vector<1x128xf32> to vector<8x128xf32>
    %348 = arith.subf %340, %347 : vector<8x128xf32>
    %349 = arith.mulf %348, %348 : vector<8x128xf32>
    %cst_83 = arith.constant dense<0.000000e+00> : vector<128xf32>
    %350 = vector.multi_reduction <add>, %349, %cst_83 [0] : vector<8x128xf32> to vector<128xf32>
    %351 = vector.shape_cast %350 : vector<128xf32> to vector<1x128xf32>
    %cst_84 = arith.constant 8.000000e+00 : f32
    %352 = vector.broadcast %cst_84 : f32 to vector<1x128xf32>
    %353 = arith.divf %351, %352 : vector<1x128xf32>
    %354 = vector.broadcast %346 : vector<1x128xf32> to vector<8x128xf32>
    %355 = arith.subf %340, %354 : vector<8x128xf32>
    %cst_85 = arith.constant 9.99999974E-6 : f32
    %356 = vector.broadcast %cst_85 : f32 to vector<1x128xf32>
    %357 = arith.addf %353, %356 : vector<1x128xf32>
    %358 = math.rsqrt %357 : vector<1x128xf32>
    %359 = vector.broadcast %358 : vector<1x128xf32> to vector<8x128xf32>
    %360 = arith.mulf %355, %359 : vector<8x128xf32>
    %361 = vector.broadcast %341 : vector<1x128xf32> to vector<8x128xf32>
    %362 = arith.mulf %360, %361 : vector<8x128xf32>
    %363 = vector.broadcast %342 : vector<1x128xf32> to vector<8x128xf32>
    %364 = arith.addf %362, %363 : vector<8x128xf32>
    %cst_86 = arith.constant 0.000000e+00 : f32
    %365 = vector.broadcast %cst_86 : f32 to vector<8x128xf32>
    %366 = arith.maximumf %364, %365 : vector<8x128xf32>
    %c464 = arith.constant 464 : index
    %c0_87 = arith.constant 0 : index
    %367 = vector.load %arg1[%c464, %c0_87] : memref<600x128xf32, #tpu.memory_space<vmem>>, vector<128x4xf32>
    %cst_88 = arith.constant dense<0.000000e+00> : vector<8x4xf32>
    %368 = tpu.matmul %366, %367, %cst_88 {dimension_numbers = #tpu.dot_dimension_numbers<[1], [0], [0], [1], [0, 0, 1, 1], [], []>} : vector<8x128xf32>, vector<128x4xf32>, vector<8x4xf32> -> vector<8x4xf32>
    %c592 = arith.constant 592 : index
    %c0_89 = arith.constant 0 : index
    %369 = vector.load %arg1[%c592, %c0_89] : memref<600x128xf32, #tpu.memory_space<vmem>>, vector<1x4xf32>
    %370 = vector.broadcast %369 : vector<1x4xf32> to vector<8x4xf32>
    %371 = arith.addf %368, %370 : vector<8x4xf32>
    %372 = arith.negf %371 : vector<8x4xf32>
    %373 = math.exp %372 : vector<8x4xf32>
    %cst_90 = arith.constant 1.000000e+00 : f32
    %374 = vector.broadcast %cst_90 : f32 to vector<8x4xf32>
    %375 = arith.addf %374, %373 : vector<8x4xf32>
    %376 = arith.divf %374, %375 : vector<8x4xf32>
    %cst_91 = arith.constant 0.000000e+00 : f32
    %377 = vector.broadcast %cst_91 : f32 to vector<8x1xf32>
    %378 = vector.extract_strided_slice %376 {offsets = [0, 0], sizes = [8, 1], strides = [1, 1]} : vector<8x4xf32> to vector<8x1xf32>
    %379 = arith.select %3, %378, %377 : vector<8x1xi1>, vector<8x1xf32>
    %380 = vector.extract_strided_slice %376 {offsets = [0, 1], sizes = [8, 1], strides = [1, 1]} : vector<8x4xf32> to vector<8x1xf32>
    %381 = arith.select %5, %380, %379 : vector<8x1xi1>, vector<8x1xf32>
    %cst_92 = arith.constant 0.000000e+00 : f32
    %382 = vector.broadcast %cst_92 : f32 to vector<8x1xf32>
    %383 = vector.extract_strided_slice %376 {offsets = [0, 2], sizes = [8, 1], strides = [1, 1]} : vector<8x4xf32> to vector<8x1xf32>
    %384 = arith.select %3, %383, %382 : vector<8x1xi1>, vector<8x1xf32>
    %385 = vector.extract_strided_slice %376 {offsets = [0, 3], sizes = [8, 1], strides = [1, 1]} : vector<8x4xf32> to vector<8x1xf32>
    %386 = arith.select %5, %385, %384 : vector<8x1xi1>, vector<8x1xf32>
    %387 = tpu.concatenate %381, %386 in 1 : vector<8x1xf32>, vector<8x1xf32> -> vector<8x2xf32>
    %c0_93 = arith.constant 0 : index
    %c0_94 = arith.constant 0 : index
    %388 = vector.load %arg2[%c0_93, %c0_94] : memref<8x2xf32, #tpu.memory_space<vmem>>, vector<8x2xf32>
    tpu.vector_store %arg2[%c0_93, %c0_94], %387 {strides = array<i32>} : memref<8x2xf32, #tpu.memory_space<vmem>>, vector<8x2xf32>,
    return
  }
}

</mosaic_0001>

<llo_original>
// kernel: dcn_mmoe_forward.1
$region0: #{dcn_mmoe_forward.1}
  #allocation0 [shape = 'u32[]', space=smem, size = 0x4, offset = 0x4, fixed_abs, tag = 'smem constant byte address 0x4 - core index']
  #allocation1 [shape = 'u32[144,128]{1,0:T(1,128)}', space=vmem, size = 0x12000, scoped, tag = 'internal scratch']
  %s0 = inlined_call_operand.vmem [shape: s32[8,8], index: 0, kind: input, shape index: {}]
  %s1 = inlined_call_operand.hbm [shape: f32[600,128], index: 1, kind: input, shape index: {}]
  %s2 = inlined_call_operand.vmem [shape: f32[8,2], index: 2, kind: output, shape index: {}]
  %s3 = sld [smem:[#allocation0]]
  $region22: #{dcn_mmoe_forward.1} parent=0
    _
  %s5 = ssub.s32 1, %s3
  %s6 = scalar_select 0, %s5, %s3
  $region1: #{dcn_mmoe_forward.1} parent=0
    #allocation2 [shape = 'u8[307200]{0}', space=vmem, size = 0x4b000, scoped, tag = 'input window, operand 1, single buffered']
    #allocation3 [shape = 's32[1]{0}', space=sflag, size = 0x4, scoped, tag = 'scoped memory for dcn_mmoe_forward.1']
    %7 = vsyncpa [#allocation3], 0
    // Predicated region
    $region2: #{dcn_mmoe_forward.1} parent=1 // pred_check
      _
    $region3: #{dcn_mmoe_forward.1} parent=1 // pred_check_branch
      %9 = sbr.rel (0) target = $region5
    $region4: #{dcn_mmoe_forward.1} parent=1 // pred_region
      _
    $region5: #{dcn_mmoe_forward.1} parent=1 // pred_fallthru
      _
    // Predicated region
    $region6: #{dcn_mmoe_forward.1} parent=1 // pred_check
      _
    $region7: #{dcn_mmoe_forward.1} parent=1 // pred_check_branch
      %11 = sbr.rel (0) target = $region9
    $region8: #{dcn_mmoe_forward.1} parent=1 // pred_region
      %s13 = ssub.s32 9600, 9600
      %14 = vsyncadd [#allocation3], %s13
      %s15 = sshll.u32 [#allocation2], 4
      %s16 = int_to_ptr.vmem [resolvable:$true] %s15
      %21 = dma.hbm_to_vmem [thread:$0]  %s1, 9600, %s16, [#allocation3], 128, 128, 8
    $region9: #{dcn_mmoe_forward.1} parent=1 // pred_fallthru
      _
    // Predicated region
    $region10: #{dcn_mmoe_forward.1} parent=1 // pred_check
      _
    $region11: #{dcn_mmoe_forward.1} parent=1 // pred_check_branch
      %23 = sbr.rel (0) target = $region13
    $region12: #{dcn_mmoe_forward.1} parent=1 // pred_region
      %24 = dma.done [#allocation3], 9600
    $region13: #{dcn_mmoe_forward.1} parent=1 // pred_fallthru
      _
    %v25 = vld [vmem:[%s0] sm:$0xff]
    %vm26 = vcmp.eq.s32.totalorder %v25, 0
    %vm27 = vcmp.eq.s32.totalorder %v25, 1
    %v28 = vlaneseq
    %v29 = vand.u32 %v28, 127
    %v30 = vmul.u32 %v29, 10
    %v31 = vadd.s32 %v25, %v30
    %32 = vset.pattern.permute.xlu0 0
    %33 = vperm.xlu0 %32, %v31
    %v34 = vpop.permute.xlu0 %33
    %vm35 = vcmp.eq.s32.totalorder %v29, %v34
    %v36 = vsel %vm35, 1, 0
    %v37 = vcvt.s32.f32 %v36
    %v38 = vadd.f32 %v37, 0.0
    %39 = vset.pattern.permute.xlu0 1
    %40 = vperm.xlu0 %39, %v31
    %v41 = vpop.permute.xlu0 %40
    %vm42 = vcmp.eq.s32.totalorder %v29, %v41
    %v43 = vsel %vm42, 1, 0
    %v44 = vcvt.s32.f32 %v43
    %v45 = vadd.f32 %v38, %v44
    %46 = vset.pattern.permute.xlu0 2
    %47 = vperm.xlu0 %46, %v31
    %v48 = vpop.permute.xlu0 %47
    %vm49 = vcmp.eq.s32.totalorder %v29, %v48
    %v50 = vsel %vm49, 1, 0
    %v51 = vcvt.s32.f32 %v50
    %v52 = vadd.f32 %v45, %v51
    %53 = vset.pattern.permute.xlu0 3
    %54 = vperm.xlu0 %53, %v31
    %v55 = vpop.permute.xlu0 %54
    %vm56 = vcmp.eq.s32.totalorder %v29, %v55
    %v57 = vsel %vm56, 1, 0
    %v58 = vcvt.s32.f32 %v57
    %v59 = vadd.f32 %v52, %v58
    %60 = vset.pattern.permute.xlu0 4
    %61 = vperm.xlu0 %60, %v31
    %v62 = vpop.permute.xlu0 %61
    %vm63 = vcmp.eq.s32.totalorder %v29, %v62
    %v64 = vsel %vm63, 1, 0
    %v65 = vcvt.s32.f32 %v64
    %v66 = vadd.f32 %v59, %v65
    %67 = vset.pattern.permute.xlu0 5
    %68 = vperm.xlu0 %67, %v31
    %v69 = vpop.permute.xlu0 %68
    %vm70 = vcmp.eq.s32.totalorder %v29, %v69
    %v71 = vsel %vm70, 1, 0
    %v72 = vcvt.s32.f32 %v71
    %v73 = vadd.f32 %v66, %v72
    %74 = vset.pattern.permute.xlu0 6
    %75 = vperm.xlu0 %74, %v31
    %v76 = vpop.permute.xlu0 %75
    %vm77 = vcmp.eq.s32.totalorder %v29, %v76
    %v78 = vsel %vm77, 1, 0
    %v79 = vcvt.s32.f32 %v78
    %v80 = vadd.f32 %v73, %v79
    %81 = vset.pattern.permute.xlu0 7
    %82 = vperm.xlu0 %81, %v31
    %v83 = vpop.permute.xlu0 %82
    %vm84 = vcmp.eq.s32.totalorder %v29, %v83
    %v85 = vsel %vm84, 1, 0
    %v86 = vcvt.s32.f32 %v85
    %v87 = vadd.f32 %v80, %v86
    %v88 = vld [vmem:[#allocation2] sm:$0xff]
    %v89 = vld [vmem:[#allocation2 + $0x8] sm:$0xff]
    %v90 = vld [vmem:[#allocation2 + $0x10] sm:$0xff]
    %v91 = vld [vmem:[#allocation2 + $0x18] sm:$0xff]
    %v92 = vld [vmem:[#allocation2 + $0x20] sm:$0xff]
    %v93 = vld [vmem:[#allocation2 + $0x28] sm:$0xff]
    %v94 = vld [vmem:[#allocation2 + $0x30] sm:$0xff]
    %v95 = vld [vmem:[#allocation2 + $0x38] sm:$0xff]
    %v96 = vld [vmem:[#allocation2 + $0x40] sm:$0xff]
    %v97 = vld [vmem:[#allocation2 + $0x48] sm:$0xff]
    %vm98 = vcmask 654336
    %v100 = vsel %vm98, %v87, 0
    %102 = vmatprep.subr.mxu0 0.0
    %103 = vmatpush1.msra.mxu0 %v88
    %104 = vmatprep.subr.mxu0 0.0
    %105 = vmatpush1.msra.mxu0 %v89
    %106 = vmatprep.subr.mxu0 0.0
    %107 = vmatpush1.msra.mxu0 %v90
    %108 = vmatprep.subr.mxu0 0.0
    %109 = vmatpush1.msra.mxu0 %v91
    %110 = vmatprep.subr.mxu0 0.0
    %111 = vmatpush1.msra.mxu0 %v92
    %112 = vmatprep.subr.mxu0 0.0
    %113 = vmatpush1.msra.mxu0 %v93
    %114 = vmatprep.subr.mxu0 0.0
    %115 = vmatpush1.msra.mxu0 %v94
    %116 = vmatprep.subr.mxu0 0.0
    %117 = vmatpush1.msra.mxu0 %v95
    %118 = vmatprep.subr.mxu0 0.0
    %119 = vmatpush1.msra.mxu0 %v96
    %120 = vmatprep.subr.mxu0 0.0
    %121 = vmatpush1.msra.mxu0 %v97
    %122 = vmatprep.subr.mxu0 0.0
    %123 = vmatpush1.msra.mxu0 0.0
    %124 = vmatprep.subr.mxu0 0.0
    %125 = vmatpush1.msra.mxu0 0.0
    %126 = vmatprep.subr.mxu0 0.0
    %127 = vmatpush1.msra.mxu0 0.0
    %128 = vmatprep.subr.mxu0 0.0
    %129 = vmatpush1.msra.mxu0 0.0
    %130 = vmatprep.subr.mxu0 0.0
    %131 = vmatpush1.msra.mxu0 0.0
    %132 = vmatprep.subr.mxu0 0.0
    %133 = vmatpush1.msra.mxu0 0.0
    %134 = vmatprep.subr.mxu0 0.0
    %135 = vmatpush1.msra.mxu0 0.0
    %136 = vmatprep.subr.mxu0 0.0
    %137 = vmatpush1.msra.mxu0 0.0
    %138 = vmatprep.subr.mxu0 0.0
    %139 = vmatpush1.msra.mxu0 0.0
    %140 = vmatprep.subr.mxu0 0.0
    %141 = vmatpush1.msra.mxu0 0.0
    %142 = vmatprep.subr.mxu0 0.0
    %143 = vmatpush1.msra.mxu0 0.0
    %144 = vmatprep.subr.mxu0 0.0
    %145 = vmatpush1.msra.mxu0 0.0
    %146 = vmatprep.subr.mxu0 0.0
    %147 = vmatpush1.msra.mxu0 0.0
    %148 = vmatprep.subr.mxu0 0.0
    %149 = vmatpush1.msra.mxu0 0.0
    %150 = vmatprep.subr.mxu0 0.0
    %151 = vmatpush1.msra.mxu0 0.0
    %152 = vmatprep.subr.mxu0 0.0
    %153 = vmatpush1.msra.mxu0 0.0
    %154 = vmatprep.subr.mxu0 0.0
    %155 = vmatpush1.msra.mxu0 0.0
    %156 = vmatprep.subr.mxu0 0.0
    %157 = vmatpush1.msra.mxu0 0.0
    %158 = vmatprep.subr.mxu0 0.0
    %159 = vmatpush1.msra.mxu0 0.0
    %160 = vmatprep.subr.mxu0 0.0
    %161 = vmatpush1.msra.mxu0 0.0
    %162 = vmatprep.subr.mxu0 0.0
    %163 = vmatpush1.msra.mxu0 0.0
    %164 = vmatprep.subr.mxu0 0.0
    %165 = vmatpush1.msra.mxu0 0.0
    %166 = vmatprep.mubr.f32.mxu0 0.0
    %167 = vmatmul.mubr.f32.gmra.mrb[0].mxu0 %v100
    %v168 = vpop.f32.mrb[0].mxu0
    %v169 = vadd.f32 0.0, %v168
    %v170 = vpop.f32.mrb[0].mxu0
    %171 = vdwg.mxu0
    %v172 = vld [vmem:[#allocation2 + $0x50] sm:$0x1]
    %v173 = vld [vmem:[#allocation2 + $0x58] sm:$0x1]
    %v174 = vlaneseq
    %v175 = vshrl.u32 %v174, 7
    %v176 = vsub.s32 0, %v175
    %v177 = vrot.slane %v172, %v176
    %v178 = vmul.f32 %v169, %v177
    %vm179 = vcmask 261120
    %v180 = vsel %vm179, %v178, 0.0
    %181 = vadd.xlane.f32.xlu0 %v180
    %v182 = vpop.xlane.xlu0 %181
    %v183 = vmul.f32 %v169, %v182
    %v184 = vlaneseq
    %v185 = vshrl.u32 %v184, 7
    %v186 = vsub.s32 0, %v185
    %v187 = vrot.slane %v173, %v186
    %v188 = vadd.f32 %v183, %v187
    %v189 = vadd.f32 %v188, %v169
    %v190 = vld [vmem:[#allocation2 + $0x51] sm:$0x1]
    %v191 = vld [vmem:[#allocation2 + $0x59] sm:$0x1]
    %v192 = vlaneseq
    %v193 = vshrl.u32 %v192, 7
    %v194 = vsub.s32 0, %v193
    %v195 = vrot.slane %v190, %v194
    %v196 = vmul.f32 %v189, %v195
    %v197 = vsel %vm179, %v196, 0.0
    %198 = vadd.xlane.f32.xlu0 %v197
    %v199 = vpop.xlane.xlu0 %198
    %v200 = vmul.f32 %v169, %v199
    %v201 = vlaneseq
    %v202 = vshrl.u32 %v201, 7
    %v203 = vsub.s32 0, %v202
    %v204 = vrot.slane %v191, %v203
    %v205 = vadd.f32 %v200, %v204
    %v206 = vadd.f32 %v205, %v189
    %v207 = vld [vmem:[#allocation2 + $0x60] sm:$0xff]
    %v208 = vld [vmem:[#allocation2 + $0x68] sm:$0xff]
    %v209 = vld [vmem:[#allocation2 + $0x70] sm:$0xff]
    %v210 = vld [vmem:[#allocation2 + $0x78] sm:$0xff]
    %v211 = vld [vmem:[#allocation2 + $0x80] sm:$0x1]
    %v212 = vlaneseq
    %v213 = vshrl.u32 %v212, 7
    %v214 = vsub.s32 0, %v213
    %v215 = vrot.slane %v211, %v214
    %v217 = vsel %vm179, %v169, 0
    %219 = vmatprep.subr.mxu0 0.0
    %220 = vmatpush1.msra.mxu0 %v207
    %221 = vmatprep.subr.mxu0 0.0
    %222 = vmatpush1.msra.mxu0 %v208
    %223 = vmatprep.subr.mxu0 0.0
    %224 = vmatpush1.msra.mxu0 %v209
    %225 = vmatprep.subr.mxu0 0.0
    %226 = vmatpush1.msra.mxu0 %v210
    %227 = vmatprep.subr.mxu0 0.0
    %228 = vmatpush1.msra.mxu0 0.0
    %229 = vmatprep.subr.mxu0 0.0
    %230 = vmatpush1.msra.mxu0 0.0
    %231 = vmatprep.subr.mxu0 0.0
    %232 = vmatpush1.msra.mxu0 0.0
    %233 = vmatprep.subr.mxu0 0.0
    %234 = vmatpush1.msra.mxu0 0.0
    %235 = vmatprep.subr.mxu0 0.0
    %236 = vmatpush1.msra.mxu0 0.0
    %237 = vmatprep.subr.mxu0 0.0
    %238 = vmatpush1.msra.mxu0 0.0
    %239 = vmatprep.subr.mxu0 0.0
    %240 = vmatpush1.msra.mxu0 0.0
    %241 = vmatprep.subr.mxu0 0.0
    %242 = vmatpush1.msra.mxu0 0.0
    %243 = vmatprep.subr.mxu0 0.0
    %244 = vmatpush1.msra.mxu0 0.0
    %245 = vmatprep.subr.mxu0 0.0
    %246 = vmatpush1.msra.mxu0 0.0
    %247 = vmatprep.subr.mxu0 0.0
    %248 = vmatpush1.msra.mxu0 0.0
    %249 = vmatprep.subr.mxu0 0.0
    %250 = vmatpush1.msra.mxu0 0.0
    %251 = vmatprep.subr.mxu0 0.0
    %252 = vmatpush1.msra.mxu0 0.0
    %253 = vmatprep.subr.mxu0 0.0
    %254 = vmatpush1.msra.mxu0 0.0
    %255 = vmatprep.subr.mxu0 0.0
    %256 = vmatpush1.msra.mxu0 0.0
    %257 = vmatprep.subr.mxu0 0.0
    %258 = vmatpush1.msra.mxu0 0.0
    %259 = vmatprep.subr.mxu0 0.0
    %260 = vmatpush1.msra.mxu0 0.0
    %261 = vmatprep.subr.mxu0 0.0
    %262 = vmatpush1.msra.mxu0 0.0
    %263 = vmatprep.subr.mxu0 0.0
    %264 = vmatpush1.msra.mxu0 0.0
    %265 = vmatprep.subr.mxu0 0.0
    %266 = vmatpush1.msra.mxu0 0.0
    %267 = vmatprep.subr.mxu0 0.0
    %268 = vmatpush1.msra.mxu0 0.0
    %269 = vmatprep.subr.mxu0 0.0
    %270 = vmatpush1.msra.mxu0 0.0
    %271 = vmatprep.subr.mxu0 0.0
    %272 = vmatpush1.msra.mxu0 0.0
    %273 = vmatprep.subr.mxu0 0.0
    %274 = vmatpush1.msra.mxu0 0.0
    %275 = vmatprep.subr.mxu0 0.0
    %276 = vmatpush1.msra.mxu0 0.0
    %277 = vmatprep.subr.mxu0 0.0
    %278 = vmatpush1.msra.mxu0 0.0
    %279 = vmatprep.subr.mxu0 0.0
    %280 = vmatpush1.msra.mxu0 0.0
    %281 = vmatprep.subr.mxu0 0.0
    %282 = vmatpush1.msra.mxu0 0.0
    %283 = vmatprep.mubr.f32.mxu0 0.0
    %284 = vmatmul.mubr.f32.gmra.mrb[0].mxu0 %v217
    %v285 = vpop.f32.mrb[0].mxu0
    %v286 = vadd.f32 %v215, %v285
    %v287 = vpop.f32.mrb[0].mxu0
    %288 = vdwg.mxu0
    %v289 = vld [vmem:[#allocation2 + $0x88] sm:$0x1]
    %v290 = vld [vmem:[#allocation2 + $0x90] sm:$0x1]
    %vm291 = vcmask 523264
    %v292 = vsel %vm291, %v286, 0.0
    %v293 = vrot.slane %v292, 4
    %v294 = vadd.f32 %v292, %v293
    %v295 = vrot.slane %v294, 2
    %v296 = vadd.f32 %v294, %v295
    %v297 = vrot.slane %v296, 1
    %v298 = vadd.f32 %v296, %v297
    %v299 = vrcp.pop 8.0
    %v300 = vmul.f32 %v298, %v299
    %v301 = vsub.f32 %v286, %v300
    %v302 = vmul.f32 %v301, %v301
    %v303 = vsel %vm291, %v302, 0.0
    %v304 = vrot.slane %v303, 4
    %v305 = vadd.f32 %v303, %v304
    %v306 = vrot.slane %v305, 2
    %v307 = vadd.f32 %v305, %v306
    %v308 = vrot.slane %v307, 1
    %v309 = vadd.f32 %v307, %v308
    %v310 = vmul.f32 %v309, %v299
    %v311 = vadd.f32 %v310, 1e-05
    %v312 = vrsqrt.pop %v311
    %v313 = vmul.f32 %v301, %v312
    %v314 = vlaneseq
    %v315 = vshrl.u32 %v314, 7
    %v316 = vsub.s32 0, %v315
    %v317 = vrot.slane %v289, %v316
    %v318 = vmul.f32 %v313, %v317
    %v319 = vlaneseq
    %v320 = vshrl.u32 %v319, 7
    %v321 = vsub.s32 0, %v320
    %v322 = vrot.slane %v290, %v321
    %v323 = vadd.f32 %v318, %v322
    %v324 = vmax.f32 %v323, 0.0
    %v325 = vld [vmem:[#allocation2 + $0x98] sm:$0xff]
    %v326 = vld [vmem:[#allocation2 + $0xa0] sm:$0xff]
    %v327 = vld [vmem:[#allocation2 + $0xa8] sm:$0xff]
    %v328 = vld [vmem:[#allocation2 + $0xb0] sm:$0xff]
    %v329 = vld [vmem:[#allocation2 + $0xb8] sm:$0xff]
    %v330 = vld [vmem:[#allocation2 + $0xc0] sm:$0xff]
    %v331 = vld [vmem:[#allocation2 + $0xc8] sm:$0xff]
    %v332 = vld [vmem:[#allocation2 + $0xd0] sm:$0xff]
    %v333 = vld [vmem:[#allocation2 + $0xd8] sm:$0x1]
    %v334 = vlaneseq
    %v335 = vshrl.u32 %v334, 7
    %v336 = vsub.s32 0, %v335
    %v337 = vrot.slane %v333, %v336
    %v339 = vsel %vm291, %v324, 0
    %341 = vmatprep.subr.mxu0 0.0
    %342 = vmatpush1.msra.mxu0 %v325
    %343 = vmatprep.subr.mxu0 0.0
    %344 = vmatpush1.msra.mxu0 %v326
    %345 = vmatprep.subr.mxu0 0.0
    %346 = vmatpush1.msra.mxu0 %v327
    %347 = vmatprep.subr.mxu0 0.0
    %348 = vmatpush1.msra.mxu0 %v328
    %349 = vmatprep.subr.mxu0 0.0
    %350 = vmatpush1.msra.mxu0 %v329
    %351 = vmatprep.subr.mxu0 0.0
    %352 = vmatpush1.msra.mxu0 %v330
    %353 = vmatprep.subr.mxu0 0.0
    %354 = vmatpush1.msra.mxu0 %v331
    %355 = vmatprep.subr.mxu0 0.0
    %356 = vmatpush1.msra.mxu0 %v332
    %357 = vmatprep.subr.mxu0 0.0
    %358 = vmatpush1.msra.mxu0 0.0
    %359 = vmatprep.subr.mxu0 0.0
    %360 = vmatpush1.msra.mxu0 0.0
    %361 = vmatprep.subr.mxu0 0.0
    %362 = vmatpush1.msra.mxu0 0.0
    %363 = vmatprep.subr.mxu0 0.0
    %364 = vmatpush1.msra.mxu0 0.0
    %365 = vmatprep.subr.mxu0 0.0
    %366 = vmatpush1.msra.mxu0 0.0
    %367 = vmatprep.subr.mxu0 0.0
    %368 = vmatpush1.msra.mxu0 0.0
    %369 = vmatprep.subr.mxu0 0.0
    %370 = vmatpush1.msra.mxu0 0.0
    %371 = vmatprep.subr.mxu0 0.0
    %372 = vmatpush1.msra.mxu0 0.0
    %373 = vmatprep.subr.mxu0 0.0
    %374 = vmatpush1.msra.mxu0 0.0
    %375 = vmatprep.subr.mxu0 0.0
    %376 = vmatpush1.msra.mxu0 0.0
    %377 = vmatprep.subr.mxu0 0.0
    %378 = vmatpush1.msra.mxu0 0.0
    %379 = vmatprep.subr.mxu0 0.0
    %380 = vmatpush1.msra.mxu0 0.0
    %381 = vmatprep.subr.mxu0 0.0
    %382 = vmatpush1.msra.mxu0 0.0
    %383 = vmatprep.subr.mxu0 0.0
    %384 = vmatpush1.msra.mxu0 0.0
    %385 = vmatprep.subr.mxu0 0.0
    %386 = vmatpush1.msra.mxu0 0.0
    %387 = vmatprep.subr.mxu0 0.0
    %388 = vmatpush1.msra.mxu0 0.0
    %389 = vmatprep.subr.mxu0 0.0
    %390 = vmatpush1.msra.mxu0 0.0
    %391 = vmatprep.subr.mxu0 0.0
    %392 = vmatpush1.msra.mxu0 0.0
    %393 = vmatprep.subr.mxu0 0.0
    %394 = vmatpush1.msra.mxu0 0.0
    %395 = vmatprep.subr.mxu0 0.0
    %396 = vmatpush1.msra.mxu0 0.0
    %397 = vmatprep.subr.mxu0 0.0
    %398 = vmatpush1.msra.mxu0 0.0
    %399 = vmatprep.subr.mxu0 0.0
    %400 = vmatpush1.msra.mxu0 0.0
    %401 = vmatprep.subr.mxu0 0.0
    %402 = vmatpush1.msra.mxu0 0.0
    %403 = vmatprep.subr.mxu0 0.0
    %404 = vmatpush1.msra.mxu0 0.0
    %405 = vmatprep.mubr.f32.mxu0 0.0
    %406 = vmatmul.mubr.f32.gmra.mrb[0].mxu0 %v339
    %v407 = vpop.f32.mrb[0].mxu0
    %v408 = vadd.f32 %v337, %v407
    %v409 = vpop.f32.mrb[0].mxu0
    %410 = vdwg.mxu0
    %v411 = vld [vmem:[#allocation2 + $0xe0] sm:$0x1]
    %v412 = vld [vmem:[#allocation2 + $0xe8] sm:$0x1]
    %v413 = vsel %vm179, %v408, 0.0
    %v414 = vrot.slane %v413, 4
    %v415 = vadd.f32 %v413, %v414
    %v416 = vrot.slane %v415, 2
    %v417 = vadd.f32 %v415, %v416
    %v418 = vrot.slane %v417, 1
    %v419 = vadd.f32 %v417, %v418
    %v420 = vmul.f32 %v419, %v299
    %v421 = vsub.f32 %v408, %v420
    %v422 = vmul.f32 %v421, %v421
    %v423 = vsel %vm179, %v422, 0.0
    %v424 = vrot.slane %v423, 4
    %v425 = vadd.f32 %v423, %v424
    %v426 = vrot.slane %v425, 2
    %v427 = vadd.f32 %v425, %v426
    %v428 = vrot.slane %v427, 1
    %v429 = vadd.f32 %v427, %v428
    %v430 = vmul.f32 %v429, %v299
    %v431 = vadd.f32 %v430, 1e-05
    %v432 = vrsqrt.pop %v431
    %v433 = vmul.f32 %v421, %v432
    %v434 = vlaneseq
    %v435 = vshrl.u32 %v434, 7
    %v436 = vsub.s32 0, %v435
    %v437 = vrot.slane %v411, %v436
    %v438 = vmul.f32 %v433, %v437
    %v439 = vlaneseq
    %v440 = vshrl.u32 %v439, 7
    %v441 = vsub.s32 0, %v440
    %v442 = vrot.slane %v412, %v441
    %v443 = vadd.f32 %v438, %v442
    %v444 = vmax.f32 %v443, 0.0
    %446 = vrot.lane.b32.xlu0 %v444, 32
    %v447 = vpop.permute.xlu0 %446
    %v449 = vsel %vm179, %v206, %v447
    %v450 = vld [vmem:[#allocation2 + $0xf0] sm:$0x1]
    %v451 = vlaneseq
    %v452 = vshrl.u32 %v451, 7
    %v453 = vsub.s32 0, %v452
    %v454 = vrot.slane %v450, %v453
    %v455 = vmul.f32 %v449, %v454
    %v456 = vsel %vm291, %v455, 0.0
    %457 = vadd.xlane.f32.xlu0 %v456
    %v458 = vpop.xlane.xlu0 %457
    %v459 = vld [vmem:[#allocation2 + $0xf8] sm:$0x1]
    %v460 = vlaneseq
    %v461 = vshrl.u32 %v460, 7
    %v462 = vsub.s32 0, %v461
    %v463 = vrot.slane %v459, %v462
    %v464 = vadd.f32 %v458, %v463
    %466 = vset.pattern.permute.xlu0 0
    %467 = vperm.xlu0 %466, %v464
    %v468 = vpop.permute.xlu0 %467
    %v469 = vld [vmem:[#allocation2 + $0x100] sm:$0xff]
    %v470 = vld [vmem:[#allocation2 + $0x108] sm:$0xff]
    %v471 = vld [vmem:[#allocation2 + $0x110] sm:$0xff]
    %v472 = vld [vmem:[#allocation2 + $0x118] sm:$0xff]
    %v473 = vld [vmem:[#allocation2 + $0x120] sm:$0x1]
    %v474 = vlaneseq
    %v475 = vshrl.u32 %v474, 7
    %v476 = vsub.s32 0, %v475
    %v477 = vrot.slane %v473, %v476
    %v478 = vsel %vm179, %v468, 0
    %480 = vmatprep.subr.mxu0 0.0
    %481 = vmatpush1.msra.mxu0 %v469
    %482 = vmatprep.subr.mxu0 0.0
    %483 = vmatpush1.msra.mxu0 %v470
    %484 = vmatprep.subr.mxu0 0.0
    %485 = vmatpush1.msra.mxu0 %v471
    %486 = vmatprep.subr.mxu0 0.0
    %487 = vmatpush1.msra.mxu0 %v472
    %488 = vmatprep.subr.mxu0 0.0
    %489 = vmatpush1.msra.mxu0 0.0
    %490 = vmatprep.subr.mxu0 0.0
    %491 = vmatpush1.msra.mxu0 0.0
    %492 = vmatprep.subr.mxu0 0.0
    %493 = vmatpush1.msra.mxu0 0.0
    %494 = vmatprep.subr.mxu0 0.0
    %495 = vmatpush1.msra.mxu0 0.0
    %496 = vmatprep.subr.mxu0 0.0
    %497 = vmatpush1.msra.mxu0 0.0
    %498 = vmatprep.subr.mxu0 0.0
    %499 = vmatpush1.msra.mxu0 0.0
    %500 = vmatprep.subr.mxu0 0.0
    %501 = vmatpush1.msra.mxu0 0.0
    %502 = vmatprep.subr.mxu0 0.0
    %503 = vmatpush1.msra.mxu0 0.0
    %504 = vmatprep.subr.mxu0 0.0
    %505 = vmatpush1.msra.mxu0 0.0
    %506 = vmatprep.subr.mxu0 0.0
    %507 = vmatpush1.msra.mxu0 0.0
    %508 = vmatprep.subr.mxu0 0.0
    %509 = vmatpush1.msra.mxu0 0.0
    %510 = vmatprep.subr.mxu0 0.0
    %511 = vmatpush1.msra.mxu0 0.0
    %512 = vmatprep.subr.mxu0 0.0
    %513 = vmatpush1.msra.mxu0 0.0
    %514 = vmatprep.subr.mxu0 0.0
    %515 = vmatpush1.msra.mxu0 0.0
    %516 = vmatprep.subr.mxu0 0.0
    %517 = vmatpush1.msra.mxu0 0.0
    %518 = vmatprep.subr.mxu0 0.0
    %519 = vmatpush1.msra.mxu0 0.0
    %520 = vmatprep.subr.mxu0 0.0
    %521 = vmatpush1.msra.mxu0 0.0
    %522 = vmatprep.subr.mxu0 0.0
    %523 = vmatpush1.msra.mxu0 0.0
    %524 = vmatprep.subr.mxu0 0.0
    %525 = vmatpush1.msra.mxu0 0.0
    %526 = vmatprep.subr.mxu0 0.0
    %527 = vmatpush1.msra.mxu0 0.0
    %528 = vmatprep.subr.mxu0 0.0
    %529 = vmatpush1.msra.mxu0 0.0
    %530 = vmatprep.subr.mxu0 0.0
    %531 = vmatpush1.msra.mxu0 0.0
    %532 = vmatprep.subr.mxu0 0.0
    %533 = vmatpush1.msra.mxu0 0.0
    %534 = vmatprep.subr.mxu0 0.0
    %535 = vmatpush1.msra.mxu0 0.0
    %536 = vmatprep.subr.mxu0 0.0
    %537 = vmatpush1.msra.mxu0 0.0
    %538 = vmatprep.subr.mxu0 0.0
    %539 = vmatpush1.msra.mxu0 0.0
    %540 = vmatprep.subr.mxu0 0.0
    %541 = vmatpush1.msra.mxu0 0.0
    %542 = vmatprep.subr.mxu0 0.0
    %543 = vmatpush1.msra.mxu0 0.0
    %544 = vmatprep.mubr.f32.mxu0 0.0
    %545 = vmatmul.mubr.f32.gmra.mrb[0].mxu0 %v478
    %v546 = vpop.f32.mrb[0].mxu0
    %v547 = vadd.f32 %v477, %v546
    %v548 = vpop.f32.mrb[0].mxu0
    %549 = vdwg.mxu0
    %v550 = vld [vmem:[#allocation2 + $0x128] sm:$0x1]
    %v551 = vld [vmem:[#allocation2 + $0x130] sm:$0x1]
    %v552 = vsel %vm179, %v547, 0.0
    %553 = vadd.xlane.f32.xlu0 %v552
    %v554 = vpop.xlane.xlu0 %553
    %v555 = vrcp.pop 32.0
    %v556 = vmul.f32 %v554, %v555
    %v557 = vsub.f32 %v547, %v556
    %v558 = vmul.f32 %v557, %v557
    %v559 = vsel %vm179, %v558, 0.0
    %560 = vadd.xlane.f32.xlu0 %v559
    %v561 = vpop.xlane.xlu0 %560
    %v562 = vmul.f32 %v561, %v555
    %v563 = vadd.f32 %v562, 1e-05
    %v564 = vrsqrt.pop %v563
    %v565 = vmul.f32 %v557, %v564
    %v566 = vlaneseq
    %v567 = vshrl.u32 %v566, 7
    %v568 = vsub.s32 0, %v567
    %v569 = vrot.slane %v550, %v568
    %v570 = vmul.f32 %v565, %v569
    %v571 = vlaneseq
    %v572 = vshrl.u32 %v571, 7
    %v573 = vsub.s32 0, %v572
    %v574 = vrot.slane %v551, %v573
    %v575 = vadd.f32 %v570, %v574
    %v576 = vmax.f32 %v575, 0.0
    %v577 = vld [vmem:[#allocation2 + $0x129] sm:$0x1]
    %v578 = vld [vmem:[#allocation2 + $0x131] sm:$0x1]
    %580 = vrot.lane.b32.xlu0 %v547, 96
    %v581 = vpop.permute.xlu0 %580
    %v583 = vsel %vm179, %v581, 0.0
    %584 = vadd.xlane.f32.xlu0 %v583
    %v585 = vpop.xlane.xlu0 %584
    %v586 = vmul.f32 %v585, %v555
    %v587 = vsub.f32 %v547, %v586
    %v588 = vmul.f32 %v587, %v587
    %590 = vrot.lane.b32.xlu0 %v588, 96
    %v591 = vpop.permute.xlu0 %590
    %v593 = vsel %vm179, %v591, 0.0
    %594 = vadd.xlane.f32.xlu0 %v593
    %v595 = vpop.xlane.xlu0 %594
    %v596 = vmul.f32 %v595, %v555
    %v597 = vadd.f32 %v596, 1e-05
    %v598 = vrsqrt.pop %v597
    %v599 = vmul.f32 %v587, %v598
    %v600 = vlaneseq
    %v601 = vshrl.u32 %v600, 7
    %v602 = vsub.s32 0, %v601
    %v603 = vrot.slane %v577, %v602
    %605 = vrot.lane.b32.xlu0 %v603, 32
    %v606 = vpop.permute.xlu0 %605
    %v608 = vmul.f32 %v599, %v606
    %v609 = vlaneseq
    %v610 = vshrl.u32 %v609, 7
    %v611 = vsub.s32 0, %v610
    %v612 = vrot.slane %v578, %v611
    %614 = vrot.lane.b32.xlu0 %v612, 32
    %v615 = vpop.permute.xlu0 %614
    %v617 = vadd.f32 %v608, %v615
    %v618 = vmax.f32 %v617, 0.0
    %v619 = vld [vmem:[#allocation2 + $0x12a] sm:$0x1]
    %v620 = vld [vmem:[#allocation2 + $0x132] sm:$0x1]
    %621 = vrot.lane.b32.xlu0 %v547, 64
    %v622 = vpop.permute.xlu0 %621
    %v624 = vsel %vm179, %v622, 0.0
    %625 = vadd.xlane.f32.xlu0 %v624
    %v626 = vpop.xlane.xlu0 %625
    %v627 = vmul.f32 %v626, %v555
    %v628 = vsub.f32 %v547, %v627
    %v629 = vmul.f32 %v628, %v628
    %631 = vrot.lane.b32.xlu0 %v629, 64
    %v632 = vpop.permute.xlu0 %631
    %v634 = vsel %vm179, %v632, 0.0
    %635 = vadd.xlane.f32.xlu0 %v634
    %v636 = vpop.xlane.xlu0 %635
    %v637 = vmul.f32 %v636, %v555
    %v638 = vadd.f32 %v637, 1e-05
    %v639 = vrsqrt.pop %v638
    %v640 = vmul.f32 %v628, %v639
    %v641 = vlaneseq
    %v642 = vshrl.u32 %v641, 7
    %v643 = vsub.s32 0, %v642
    %v644 = vrot.slane %v619, %v643
    %646 = vrot.lane.b32.xlu0 %v644, 64
    %v647 = vpop.permute.xlu0 %646
    %v649 = vmul.f32 %v640, %v647
    %v650 = vlaneseq
    %v651 = vshrl.u32 %v650, 7
    %v652 = vsub.s32 0, %v651
    %v653 = vrot.slane %v620, %v652
    %655 = vrot.lane.b32.xlu0 %v653, 64
    %v656 = vpop.permute.xlu0 %655
    %v658 = vadd.f32 %v649, %v656
    %v659 = vmax.f32 %v658, 0.0
    %vm660 = vcmask 884480
    %v661 = vsel %vm660, %v547, -inf
    %662 = vmax.xlane.f32.xlu0 %v661
    %v663 = vpop.xlane.xlu0 %662
    %v664 = vsub.f32 %v547, %v663
    %v665 = vmul.f32 %v664, 1.442695
    %v666 = vpow.pop %v665
    %668 = vrot.lane.b32.xlu0 %v666, 32
    %v669 = vpop.permute.xlu0 %668
    %vm671 = vcmask 23552
    %v672 = vsel %vm671, %v669, 0.0
    %673 = vadd.xlane.f32.xlu0 %v672
    %v674 = vpop.xlane.xlu0 %673
    %v675 = vrcp.pop %v674
    %v676 = vmul.f32 1.0, %v675
    %v677 = vmul.f32 %v666, %v676
    %679 = vset.pattern.permute.xlu0 96
    %680 = vperm.xlu0 %679, %v677
    %v681 = vpop.permute.xlu0 %680
    %v683 = vmul.f32 %v681, %v576
    %v684 = vadd.f32 %v683, 0.0
    %685 = vset.pattern.permute.xlu0 97
    %686 = vperm.xlu0 %685, %v677
    %v687 = vpop.permute.xlu0 %686
    %v689 = vmul.f32 %v687, %v618
    %691 = vrot.lane.b32.xlu0 %v689, 96
    %v692 = vpop.permute.xlu0 %691
    %v694 = vadd.f32 %v684, %v692
    %695 = vset.pattern.permute.xlu0 98
    %696 = vperm.xlu0 %695, %v677
    %v697 = vpop.permute.xlu0 %696
    %v699 = vmul.f32 %v697, %v659
    %701 = vrot.lane.b32.xlu0 %v699, 64
    %v702 = vpop.permute.xlu0 %701
    %v704 = vadd.f32 %v694, %v702
    %705 = vrot.lane.b32.xlu0 %v666, 29
    %v706 = vpop.permute.xlu0 %705
    %v708 = vsel %vm671, %v706, 0.0
    %709 = vadd.xlane.f32.xlu0 %v708
    %v710 = vpop.xlane.xlu0 %709
    %v711 = vrcp.pop %v710
    %v712 = vmul.f32 1.0, %v711
    %v713 = vmul.f32 %v666, %v712
    %715 = vset.pattern.permute.xlu0 99
    %716 = vperm.xlu0 %715, %v713
    %v717 = vpop.permute.xlu0 %716
    %v719 = vmul.f32 %v717, %v576
    %v720 = vadd.f32 %v719, 0.0
    %721 = vset.pattern.permute.xlu0 100
    %722 = vperm.xlu0 %721, %v713
    %v723 = vpop.permute.xlu0 %722
    %v725 = vmul.f32 %v723, %v618
    %727 = vrot.lane.b32.xlu0 %v725, 96
    %v728 = vpop.permute.xlu0 %727
    %v730 = vadd.f32 %v720, %v728
    %731 = vset.pattern.permute.xlu0 101
    %732 = vperm.xlu0 %731, %v713
    %v733 = vpop.permute.xlu0 %732
    %v735 = vmul.f32 %v733, %v659
    %737 = vrot.lane.b32.xlu0 %v735, 64
    %v738 = vpop.permute.xlu0 %737
    %v740 = vadd.f32 %v730, %v738
    %741 = vrot.lane.b32.xlu0 %v666, 26
    %v742 = vpop.permute.xlu0 %741
    %v744 = vsel %vm671, %v742, 0.0
    %745 = vadd.xlane.f32.xlu0 %v744
    %v746 = vpop.xlane.xlu0 %745
    %v747 = vrcp.pop %v746
    %v748 = vmul.f32 1.0, %v747
    %v749 = vmul.f32 %v666, %v748
    %751 = vset.pattern.permute.xlu0 102
    %752 = vperm.xlu0 %751, %v749
    %v753 = vpop.permute.xlu0 %752
    %v755 = vmul.f32 %v753, %v576
    %v756 = vadd.f32 %v755, 0.0
    %757 = vset.pattern.permute.xlu0 103
    %758 = vperm.xlu0 %757, %v749
    %v759 = vpop.permute.xlu0 %758
    %v761 = vmul.f32 %v759, %v618
    %763 = vrot.lane.b32.xlu0 %v761, 96
    %v764 = vpop.permute.xlu0 %763
    %v766 = vadd.f32 %v756, %v764
    %767 = vset.pattern.permute.xlu0 104
    %768 = vperm.xlu0 %767, %v749
    %v769 = vpop.permute.xlu0 %768
    %v771 = vmul.f32 %v769, %v659
    %773 = vrot.lane.b32.xlu0 %v771, 64
    %v774 = vpop.permute.xlu0 %773
    %v776 = vadd.f32 %v766, %v774
    %777 = vrot.lane.b32.xlu0 %v666, 23
    %v778 = vpop.permute.xlu0 %777
    %v780 = vsel %vm671, %v778, 0.0
    %781 = vadd.xlane.f32.xlu0 %v780
    %v782 = vpop.xlane.xlu0 %781
    %v783 = vrcp.pop %v782
    %v784 = vmul.f32 1.0, %v783
    %v785 = vmul.f32 %v666, %v784
    %787 = vset.pattern.permute.xlu0 105
    %788 = vperm.xlu0 %787, %v785
    %v789 = vpop.permute.xlu0 %788
    %v791 = vmul.f32 %v789, %v576
    %v792 = vadd.f32 %v791, 0.0
    %793 = vset.pattern.permute.xlu0 106
    %794 = vperm.xlu0 %793, %v785
    %v795 = vpop.permute.xlu0 %794
    %v797 = vmul.f32 %v795, %v618
    %799 = vrot.lane.b32.xlu0 %v797, 96
    %v800 = vpop.permute.xlu0 %799
    %v802 = vadd.f32 %v792, %v800
    %803 = vset.pattern.permute.xlu0 107
    %804 = vperm.xlu0 %803, %v785
    %v805 = vpop.permute.xlu0 %804
    %v807 = vmul.f32 %v805, %v659
    %809 = vrot.lane.b32.xlu0 %v807, 64
    %v810 = vpop.permute.xlu0 %809
    %v812 = vadd.f32 %v802, %v810
    %814 = vrot.lane.b32.xlu0 %v740, 32
    %v815 = vpop.permute.xlu0 %814
    %818 = vrot.lane.b32.xlu0 %v776, 64
    %v819 = vpop.permute.xlu0 %818
    %822 = vrot.lane.b32.xlu0 %v812, 96
    %v823 = vpop.permute.xlu0 %822
    %v825 = vsel %vm179, %v704, %v815
    %v826 = vsel %vm291, %v825, %v819
    %vm827 = vcmask 785408
    %v828 = vsel %vm827, %v826, %v823
    %v829 = vld [vmem:[#allocation2 + $0x138] sm:$0xff]
    %v830 = vld [vmem:[#allocation2 + $0x140] sm:$0xff]
    %v831 = vld [vmem:[#allocation2 + $0x148] sm:$0xff]
    %v832 = vld [vmem:[#allocation2 + $0x150] sm:$0xff]
    %v833 = vld [vmem:[#allocation2 + $0x158] sm:$0xff]
    %v834 = vld [vmem:[#allocation2 + $0x160] sm:$0xff]
    %v835 = vld [vmem:[#allocation2 + $0x168] sm:$0xff]
    %v836 = vld [vmem:[#allocation2 + $0x170] sm:$0xff]
    %v837 = vld [vmem:[#allocation2 + $0x178] sm:$0xff]
    %v838 = vld [vmem:[#allocation2 + $0x180] sm:$0xff]
    %v839 = vld [vmem:[#allocation2 + $0x188] sm:$0xff]
    %v840 = vld [vmem:[#allocation2 + $0x190] sm:$0xff]
    %v841 = vld [vmem:[#allocation2 + $0x198] sm:$0xff]
    %v842 = vld [vmem:[#allocation2 + $0x1a0] sm:$0xff]
    %v843 = vld [vmem:[#allocation2 + $0x1a8] sm:$0xff]
    %v844 = vld [vmem:[#allocation2 + $0x1b0] sm:$0xff]
    %v845 = vld [vmem:[#allocation2 + $0x1b8] sm:$0x1]
    %v846 = vlaneseq
    %v847 = vshrl.u32 %v846, 7
    %v848 = vsub.s32 0, %v847
    %v849 = vrot.slane %v845, %v848
    %850 = vmatprep.subr.mxu0 0.0
    %851 = vmatpush1.msra.mxu0 %v829
    %852 = vmatprep.subr.mxu0 0.0
    %853 = vmatpush1.msra.mxu0 %v830
    %854 = vmatprep.subr.mxu0 0.0
    %855 = vmatpush1.msra.mxu0 %v831
    %856 = vmatprep.subr.mxu0 0.0
    %857 = vmatpush1.msra.mxu0 %v832
    %858 = vmatprep.subr.mxu0 0.0
    %859 = vmatpush1.msra.mxu0 %v833
    %860 = vmatprep.subr.mxu0 0.0
    %861 = vmatpush1.msra.mxu0 %v834
    %862 = vmatprep.subr.mxu0 0.0
    %863 = vmatpush1.msra.mxu0 %v835
    %864 = vmatprep.subr.mxu0 0.0
    %865 = vmatpush1.msra.mxu0 %v836
    %866 = vmatprep.subr.mxu0 0.0
    %867 = vmatpush1.msra.mxu0 %v837
    %868 = vmatprep.subr.mxu0 0.0
    %869 = vmatpush1.msra.mxu0 %v838
    %870 = vmatprep.subr.mxu0 0.0
    %871 = vmatpush1.msra.mxu0 %v839
    %872 = vmatprep.subr.mxu0 0.0
    %873 = vmatpush1.msra.mxu0 %v840
    %874 = vmatprep.subr.mxu0 0.0
    %875 = vmatpush1.msra.mxu0 %v841
    %876 = vmatprep.subr.mxu0 0.0
    %877 = vmatpush1.msra.mxu0 %v842
    %878 = vmatprep.subr.mxu0 0.0
    %879 = vmatpush1.msra.mxu0 %v843
    %880 = vmatprep.subr.mxu0 0.0
    %881 = vmatpush1.msra.mxu0 %v844
    %882 = vmatprep.subr.mxu0 0.0
    %883 = vmatpush1.msra.mxu0 0.0
    %884 = vmatprep.subr.mxu0 0.0
    %885 = vmatpush1.msra.mxu0 0.0
    %886 = vmatprep.subr.mxu0 0.0
    %887 = vmatpush1.msra.mxu0 0.0
    %888 = vmatprep.subr.mxu0 0.0
    %889 = vmatpush1.msra.mxu0 0.0
    %890 = vmatprep.subr.mxu0 0.0
    %891 = vmatpush1.msra.mxu0 0.0
    %892 = vmatprep.subr.mxu0 0.0
    %893 = vmatpush1.msra.mxu0 0.0
    %894 = vmatprep.subr.mxu0 0.0
    %895 = vmatpush1.msra.mxu0 0.0
    %896 = vmatprep.subr.mxu0 0.0
    %897 = vmatpush1.msra.mxu0 0.0
    %898 = vmatprep.subr.mxu0 0.0
    %899 = vmatpush1.msra.mxu0 0.0
    %900 = vmatprep.subr.mxu0 0.0
    %901 = vmatpush1.msra.mxu0 0.0
    %902 = vmatprep.subr.mxu0 0.0
    %903 = vmatpush1.msra.mxu0 0.0
    %904 = vmatprep.subr.mxu0 0.0
    %905 = vmatpush1.msra.mxu0 0.0
    %906 = vmatprep.subr.mxu0 0.0
    %907 = vmatpush1.msra.mxu0 0.0
    %908 = vmatprep.subr.mxu0 0.0
    %909 = vmatpush1.msra.mxu0 0.0
    %910 = vmatprep.subr.mxu0 0.0
    %911 = vmatpush1.msra.mxu0 0.0
    %912 = vmatprep.subr.mxu0 0.0
    %913 = vmatpush1.msra.mxu0 0.0
    %914 = vmatprep.mubr.f32.mxu0 0.0
    %915 = vmatmul.mubr.f32.gmra.mrb[0].mxu0 %v828
    %v916 = vpop.f32.mrb[0].mxu0
    %v917 = vadd.f32 %v849, %v916
    %v918 = vpop.f32.mrb[0].mxu0
    %919 = vdwg.mxu0
    %v920 = vld [vmem:[#allocation2 + $0x1c0] sm:$0x1]
    %v921 = vld [vmem:[#allocation2 + $0x1c8] sm:$0x1]
    %v922 = vrot.slane %v917, 4
    %v923 = vadd.f32 %v917, %v922
    %v924 = vrot.slane %v923, 2
    %v925 = vadd.f32 %v923, %v924
    %v926 = vrot.slane %v925, 1
    %v927 = vadd.f32 %v925, %v926
    %v928 = vmul.f32 %v927, %v299
    %v929 = vsub.f32 %v917, %v928
    %v930 = vmul.f32 %v929, %v929
    %v931 = vrot.slane %v930, 4
    %v932 = vadd.f32 %v930, %v931
    %v933 = vrot.slane %v932, 2
    %v934 = vadd.f32 %v932, %v933
    %v935 = vrot.slane %v934, 1
    %v936 = vadd.f32 %v934, %v935
    %v937 = vmul.f32 %v936, %v299
    %v938 = vadd.f32 %v937, 1e-05
    %v939 = vrsqrt.pop %v938
    %v940 = vmul.f32 %v929, %v939
    %v941 = vlaneseq
    %v942 = vshrl.u32 %v941, 7
    %v943 = vsub.s32 0, %v942
    %v944 = vrot.slane %v920, %v943
    %v945 = vmul.f32 %v940, %v944
    %v946 = vlaneseq
    %v947 = vshrl.u32 %v946, 7
    %v948 = vsub.s32 0, %v947
    %v949 = vrot.slane %v921, %v948
    %v950 = vadd.f32 %v945, %v949
    %v951 = vmax.f32 %v950, 0.0
    %v952 = vld [vmem:[#allocation2 + $0x1d0] sm:$0xff]
    %v953 = vld [vmem:[#allocation2 + $0x1d8] sm:$0xff]
    %v954 = vld [vmem:[#allocation2 + $0x1e0] sm:$0xff]
    %v955 = vld [vmem:[#allocation2 + $0x1e8] sm:$0xff]
    %v956 = vld [vmem:[#allocation2 + $0x1f0] sm:$0xff]
    %v957 = vld [vmem:[#allocation2 + $0x1f8] sm:$0xff]
    %v958 = vld [vmem:[#allocation2 + $0x200] sm:$0xff]
    %v959 = vld [vmem:[#allocation2 + $0x208] sm:$0xff]
    %v960 = vld [vmem:[#allocation2 + $0x210] sm:$0xff]
    %v961 = vld [vmem:[#allocation2 + $0x218] sm:$0xff]
    %v962 = vld [vmem:[#allocation2 + $0x220] sm:$0xff]
    %v963 = vld [vmem:[#allocation2 + $0x228] sm:$0xff]
    %v964 = vld [vmem:[#allocation2 + $0x230] sm:$0xff]
    %v965 = vld [vmem:[#allocation2 + $0x238] sm:$0xff]
    %v966 = vld [vmem:[#allocation2 + $0x240] sm:$0xff]
    %v967 = vld [vmem:[#allocation2 + $0x248] sm:$0xff]
    %v968 = vld [vmem:[#allocation2 + $0x250] sm:$0x1]
    %v969 = vlaneseq
    %v970 = vshrl.u32 %v969, 7
    %v971 = vsub.s32 0, %v970
    %v972 = vrot.slane %v968, %v971
    %973 = vmatprep.subr.mxu0 0.0
    %974 = vmatpush1.msra.mxu0 %v952
    %975 = vmatprep.subr.mxu0 0.0
    %976 = vmatpush1.msra.mxu0 %v953
    %977 = vmatprep.subr.mxu0 0.0
    %978 = vmatpush1.msra.mxu0 %v954
    %979 = vmatprep.subr.mxu0 0.0
    %980 = vmatpush1.msra.mxu0 %v955
    %981 = vmatprep.subr.mxu0 0.0
    %982 = vmatpush1.msra.mxu0 %v956
    %983 = vmatprep.subr.mxu0 0.0
    %984 = vmatpush1.msra.mxu0 %v957
    %985 = vmatprep.subr.mxu0 0.0
    %986 = vmatpush1.msra.mxu0 %v958
    %987 = vmatprep.subr.mxu0 0.0
    %988 = vmatpush1.msra.mxu0 %v959
    %989 = vmatprep.subr.mxu0 0.0
    %990 = vmatpush1.msra.mxu0 %v960
    %991 = vmatprep.subr.mxu0 0.0
    %992 = vmatpush1.msra.mxu0 %v961
    %993 = vmatprep.subr.mxu0 0.0
    %994 = vmatpush1.msra.mxu0 %v962
    %995 = vmatprep.subr.mxu0 0.0
    %996 = vmatpush1.msra.mxu0 %v963
    %997 = vmatprep.subr.mxu0 0.0
    %998 = vmatpush1.msra.mxu0 %v964
    %999 = vmatprep.subr.mxu0 0.0
    %1000 = vmatpush1.msra.mxu0 %v965
    %1001 = vmatprep.subr.mxu0 0.0
    %1002 = vmatpush1.msra.mxu0 %v966
    %1003 = vmatprep.subr.mxu0 0.0
    %1004 = vmatpush1.msra.mxu0 %v967
    %1005 = vmatprep.subr.mxu0 0.0
    %1006 = vmatpush1.msra.mxu0 0.0
    %1007 = vmatprep.subr.mxu0 0.0
    %1008 = vmatpush1.msra.mxu0 0.0
    %1009 = vmatprep.subr.mxu0 0.0
    %1010 = vmatpush1.msra.mxu0 0.0
    %1011 = vmatprep.subr.mxu0 0.0
    %1012 = vmatpush1.msra.mxu0 0.0
    %1013 = vmatprep.subr.mxu0 0.0
    %1014 = vmatpush1.msra.mxu0 0.0
    %1015 = vmatprep.subr.mxu0 0.0
    %1016 = vmatpush1.msra.mxu0 0.0
    %1017 = vmatprep.subr.mxu0 0.0
    %1018 = vmatpush1.msra.mxu0 0.0
    %1019 = vmatprep.subr.mxu0 0.0
    %1020 = vmatpush1.msra.mxu0 0.0
    %1021 = vmatprep.subr.mxu0 0.0
    %1022 = vmatpush1.msra.mxu0 0.0
    %1023 = vmatprep.subr.mxu0 0.0
    %1024 = vmatpush1.msra.mxu0 0.0
    %1025 = vmatprep.subr.mxu0 0.0
    %1026 = vmatpush1.msra.mxu0 0.0
    %1027 = vmatprep.subr.mxu0 0.0
    %1028 = vmatpush1.msra.mxu0 0.0
    %1029 = vmatprep.subr.mxu0 0.0
    %1030 = vmatpush1.msra.mxu0 0.0
    %1031 = vmatprep.subr.mxu0 0.0
    %1032 = vmatpush1.msra.mxu0 0.0
    %1033 = vmatprep.subr.mxu0 0.0
    %1034 = vmatpush1.msra.mxu0 0.0
    %1035 = vmatprep.subr.mxu0 0.0
    %1036 = vmatpush1.msra.mxu0 0.0
    %1037 = vmatprep.mubr.f32.mxu0 0.0
    %1038 = vmatmul.mubr.f32.gmra.mrb[0].mxu0 %v951
    %v1039 = vpop.f32.mrb[0].mxu0
    %v1040 = vadd.f32 %v972, %v1039
    %v1041 = vpop.f32.mrb[0].mxu0
    %1042 = vdwg.mxu0
    %v1043 = vxor.u32 %v1040, 2147483648
    %v1044 = vmul.f32 %v1043, 1.442695
    %v1045 = vpow.pop %v1044
    %v1046 = vadd.f32 %v1045, 1.0
    %v1047 = vrcp.pop %v1046
    %v1048 = vmul.f32 1.0, %v1047
    %1050 = vrot.lane.b32.xlu0 %v1048, 7
    %v1051 = vpop.permute.xlu0 %1050
    %v1053 = vsel %vm26, %v1051, 0.0
    %1054 = vrot.lane.b32.xlu0 %v1048, 6
    %v1055 = vpop.permute.xlu0 %1054
    %v1057 = vsel %vm27, %v1055, %v1053
    %1058 = vrot.lane.b32.xlu0 %v1048, 5
    %v1059 = vpop.permute.xlu0 %1058
    %v1061 = vsel %vm26, %v1059, 0.0
    %1062 = vrot.lane.b32.xlu0 %v1048, 4
    %v1063 = vpop.permute.xlu0 %1062
    %v1065 = vsel %vm27, %v1063, %v1061
    %1067 = vrot.lane.b32.xlu0 %v1057, 121
    %v1068 = vpop.permute.xlu0 %1067
    %1071 = vrot.lane.b32.xlu0 %v1065, 122
    %v1072 = vpop.permute.xlu0 %1071
    %vm1074 = vcmask 7168
    %v1075 = vsel %vm1074, %v1068, %v1072
    %vm1076 = vcmask 15360
    %1077 = vst.msk [vmem:[%s2] sm:$0xff] %vm1076, %v1075
    // Predicated region
    $region14: #{dcn_mmoe_forward.1} parent=1 // pred_check
      _
    $region15: #{dcn_mmoe_forward.1} parent=1 // pred_check_branch
      %1079 = sbr.rel (0) target = $region17
    $region16: #{dcn_mmoe_forward.1} parent=1 // pred_region
      _
    $region17: #{dcn_mmoe_forward.1} parent=1 // pred_fallthru
      _
    // Predicated region
    $region18: #{dcn_mmoe_forward.1} parent=1 // pred_check
      _
    $region19: #{dcn_mmoe_forward.1} parent=1 // pred_check_branch
      %1081 = sbr.rel (0) target = $region21
    $region20: #{dcn_mmoe_forward.1} parent=1 // pred_region
      _
    $region21: #{dcn_mmoe_forward.1} parent=1 // pred_fallthru
      _
    %1082 = vsyncpa [#allocation3], 1

</llo_original>
